<compile_context>
chip_gen: v7x
topology: tpu7x:2x2x1
jax: 0.10.0
libtpu: 0.0.40
codegen_flags: <defaults>
</compile_context>

<pallas_src>
import math

import jax
import jax.numpy as jnp
from jax import lax
from jax.experimental import pallas as pl
from jax.experimental.pallas import tpu as pltpu


def _gelu_exact(x):
    # PyTorch nn.GELU() default: exact erf formulation.
    return 0.5 * x * (1.0 + lax.erf(x * jnp.float32(1.0 / math.sqrt(2.0))))


def _layernorm_1pass(x, gamma, beta, eps=1e-5):
    # Single-pass LayerNorm: the two cross-lane reductions (sum, sum-of-squares)
    # are independent, so they can issue back-to-back on the XLUs instead of
    # serializing reduce -> subtract/square -> reduce.
    inv_n = jnp.float32(1.0 / x.shape[-1])
    s1 = jnp.sum(x, axis=-1, keepdims=True)
    s2 = jnp.sum(x * x, axis=-1, keepdims=True)
    mu = s1 * inv_n
    var = s2 * inv_n - mu * mu          # E[x^2] - mu^2 (eps guards tiny negatives)
    return (x - mu) * lax.rsqrt(var + eps) * gamma + beta


def _layernorm_2pass(x, gamma, beta, eps=1e-5):
    # Two-pass reference (matches PyTorch nn.LayerNorm: biased var, eps in sqrt).
    mu = jnp.mean(x, axis=-1, keepdims=True)
    var = jnp.mean((x - mu) ** 2, axis=-1, keepdims=True)
    return (x - mu) * lax.rsqrt(var + eps) * gamma + beta


def odefunc_kernel(x_ref, w1_ref, w2_ref, w3_ref, vecs_ref, b3_ref, out_ref):
    # Packed hidden-dim vectors (one resident (6,H) block):
    #   rows = [b_in, gamma1, beta1, b_hid, gamma2, beta2]
    b1 = vecs_ref[0:1, :]
    g1 = vecs_ref[1:2, :]
    be1 = vecs_ref[2:3, :]
    b2 = vecs_ref[3:4, :]
    g2 = vecs_ref[4:5, :]
    be2 = vecs_ref[5:6, :]

    # linear_in -> GELU -> LayerNorm1 -> Dropout(identity, eval mode)
    h = jnp.dot(x_ref[...], w1_ref[...], preferred_element_type=jnp.float32) + b1
    h = _gelu_exact(h)
    h = _layernorm_1pass(h, g1, be1)

    # linear_hidden -> GELU -> LayerNorm2 -> Dropout(identity, eval mode)
    h = jnp.dot(h, w2_ref[...], preferred_element_type=jnp.float32) + b2
    h = _gelu_exact(h)
    h = _layernorm_1pass(h, g2, be2)

    # linear_out, then 0.5*out + 0.5*residual == 0.5*(out + residual) (exact).
    # Residual is re-read here so x is not a live vreg range across the body.
    y = jnp.dot(h, w3_ref[...], preferred_element_type=jnp.float32) + b3_ref[...]
    out_ref[...] = (0.5 * (y + x_ref[...])).astype(out_ref.dtype)


def _round_up(n, m):
    return ((n + m - 1) // m) * m


def _resident(shape):
    # Whole-array block with a constant index_map: Pallas DMAs it once and the
    # block stays VMEM-resident across grid steps (no re-fetch).
    return pl.BlockSpec(shape, lambda i: (0,) * len(shape))


def _choose_tile(batch, max_rows=512):
    # Aim for a >=2-step grid (v7x megacore split) with the biggest tile that
    # still makes sense; tile rows must be a multiple of 8 (sublane).
    target = pl.cdiv(batch, 2) if batch > max_rows // 2 else batch
    target = min(target, max_rows)
    return max(8, _round_up(target, 8))


def odefunc_forward(t, x, params, *, max_block_rows=512):
    """t is ignored (as in the PyTorch module). x: (B, feature_dim) f32."""
    del t
    x = x.astype(jnp.float32)
    B, F = x.shape
    H = params["w1"].shape[1]

    tm = _choose_tile(B, max_block_rows)
    grid = (pl.cdiv(B, tm),)   # partial last block handled by Pallas (masked stores)

    return pl.pallas_call(
        odefunc_kernel,
        out_shape=jax.ShapeDtypeStruct((B, F), jnp.float32),
        grid_spec=pltpu.PrefetchScalarGridSpec(
            num_scalar_prefetch=0,
            grid=grid,
            in_specs=[
                pl.BlockSpec((tm, F), lambda i: (i, 0)),   # x: batch-tiled
                _resident((F, H)),                         # w1 (in, out)
                _resident((H, H)),                         # w2
                _resident((H, F)),                         # w3
                _resident((6, H)),                         # packed b1,g1,be1,b2,g2,be2
                _resident((1, F)),                         # b3
            ],
            out_specs=pl.BlockSpec((tm, F), lambda i: (i, 0)),
        ),
        # Batch tiles are independent -> shard the 1-D grid across TensorCores
        # on v7x (no-op on single-TC v5e/v6e).  At F=H=128 nothing comes close
        # to VMEM limits; set vmem_limit_bytes here only if the model scales.
        compiler_params=pltpu.CompilerParams(
            dimension_semantics=("parallel",),
        ),
    )(x, params["w1"], params["w2"], params["w3"], params["vecs"], params["b3"])


def _xavier_normal(key, shape):
    fan_in, fan_out = shape[0], shape[1]
    std = math.sqrt(2.0 / (fan_in + fan_out))
    return std * jax.random.normal(key, shape, dtype=jnp.float32)


def init_params(key, feature_dim, hidden_dim):
    k1, k2, k3 = jax.random.split(key, 3)
    F, H = feature_dim, hidden_dim
    # Packed (6, H) vector block: [b_in, gamma1, beta1, b_hid, gamma2, beta2].
    vecs = jnp.stack([
        jnp.zeros((H,), jnp.float32),   # b_in   (PyTorch init: 0)
        jnp.ones((H,), jnp.float32),    # gamma1 (LayerNorm weight)
        jnp.zeros((H,), jnp.float32),   # beta1
        jnp.zeros((H,), jnp.float32),   # b_hid
        jnp.ones((H,), jnp.float32),    # gamma2
        jnp.zeros((H,), jnp.float32),   # beta2
    ])
    return {
        # Linear weights stored as (in, out) = PyTorch weight.T.
        "w1": _xavier_normal(k1, (F, H)),
        "w2": _xavier_normal(k2, (H, H)),
        "w3": _xavier_normal(k3, (H, F)),
        "vecs": vecs,
        "b3": jnp.zeros((1, F), jnp.float32),
    }


def reference_forward(t, x, p):
    """Pure-JAX reference mirroring the PyTorch eval-mode forward."""
    del t
    hp = lax.Precision.HIGHEST
    b1, g1, be1, b2, g2, be2 = (p["vecs"][i] for i in range(6))
    residual = x
    out = _gelu_exact(jnp.dot(x, p["w1"], precision=hp) + b1)
    out = _layernorm_2pass(out, g1, be1)
    out = _gelu_exact(jnp.dot(out, p["w2"], precision=hp) + b2)
    out = _layernorm_2pass(out, g2, be2)
    out = jnp.dot(out, p["w3"], precision=hp) + p["b3"]
    return out * 0.5 + residual * 0.5


if __name__ == "__main__":
    # Lane-dense shapes: feature/hidden dims are multiples of 128 (no masked
    # lane stores).  batch=500 is deliberately NOT a multiple of the tile, so
    # this run exercises both the 2-step parallel grid and the masked partial
    # last block (tile = 256 rows, grid = 2).
    feature_dim = 128
    hidden_dim = 128
    batch = 500

    key = jax.random.PRNGKey(0)
    pkey, xkey = jax.random.split(key)
    params = init_params(pkey, feature_dim, hidden_dim)
    x = jax.random.normal(xkey, (batch, feature_dim), dtype=jnp.float32)
    t = jnp.float32(0.0)   # unused by the module's forward

    out = jax.block_until_ready(odefunc_forward(t, x, params))

    ref = reference_forward(t, x, params)
    assert out.shape == (batch, feature_dim)
    assert jnp.allclose(out, ref, atol=1e-4, rtol=1e-4), (
        float(jnp.max(jnp.abs(out - ref))))

    # TODO(synk): nn.Dropout(0.1) is intentionally identity (eval-mode forward);
    # training-mode dropout would use pltpu.prng_seed / pltpu.prng_random_bits.
    print("KERNEL_OK")
</pallas_src>

<mosaic_0001>
module attributes {stable_mosaic.version = 11 : i64} {
  func.func @odefunc_kernel(%arg0: i32, %arg1: memref<256x128xf32, #tpu.memory_space<vmem>>, %arg2: memref<128x128xf32, #tpu.memory_space<vmem>>, %arg3: memref<128x128xf32, #tpu.memory_space<vmem>>, %arg4: memref<128x128xf32, #tpu.memory_space<vmem>>, %arg5: memref<6x128xf32, #tpu.memory_space<vmem>>, %arg6: memref<1x128xf32, #tpu.memory_space<vmem>>, %arg7: memref<256x128xf32, #tpu.memory_space<vmem>>) attributes {dimension_semantics = [#tpu.dimension_semantics<parallel>], iteration_bounds = array<i64: 2>, scalar_prefetch = 0 : i64, scratch_operands = 0 : i64, tpu.core_type = #tpu.core_type<tc>, window_params = [{transform_indices = @transform_0, window_bounds = array<i64: 256, 128>}, {pipeline_mode = #tpu.pipeline_mode<synchronous>, transform_indices = @transform_1, window_bounds = array<i64: 128, 128>}, {pipeline_mode = #tpu.pipeline_mode<synchronous>, transform_indices = @transform_2, window_bounds = array<i64: 128, 128>}, {pipeline_mode = #tpu.pipeline_mode<synchronous>, transform_indices = @transform_3, window_bounds = array<i64: 128, 128>}, {pipeline_mode = #tpu.pipeline_mode<synchronous>, transform_indices = @transform_4, window_bounds = array<i64: 6, 128>}, {pipeline_mode = #tpu.pipeline_mode<synchronous>, transform_indices = @transform_5, window_bounds = array<i64: 1, 128>}, {transform_indices = @transform_6, window_bounds = array<i64: 256, 128>}]} {
    %c0 = arith.constant 0 : index
    %c0_0 = arith.constant 0 : index
    %0 = vector.load %arg5[%c0, %c0_0] : memref<6x128xf32, #tpu.memory_space<vmem>>, vector<1x128xf32>
    %c1 = arith.constant 1 : index
    %c0_1 = arith.constant 0 : index
    %1 = vector.load %arg5[%c1, %c0_1] : memref<6x128xf32, #tpu.memory_space<vmem>>, vector<1x128xf32>
    %c2 = arith.constant 2 : index
    %c0_2 = arith.constant 0 : index
    %2 = vector.load %arg5[%c2, %c0_2] : memref<6x128xf32, #tpu.memory_space<vmem>>, vector<1x128xf32>
    %c3 = arith.constant 3 : index
    %c0_3 = arith.constant 0 : index
    %3 = vector.load %arg5[%c3, %c0_3] : memref<6x128xf32, #tpu.memory_space<vmem>>, vector<1x128xf32>
    %c4 = arith.constant 4 : index
    %c0_4 = arith.constant 0 : index
    %4 = vector.load %arg5[%c4, %c0_4] : memref<6x128xf32, #tpu.memory_space<vmem>>, vector<1x128xf32>
    %c5 = arith.constant 5 : index
    %c0_5 = arith.constant 0 : index
    %5 = vector.load %arg5[%c5, %c0_5] : memref<6x128xf32, #tpu.memory_space<vmem>>, vector<1x128xf32>
    %c0_6 = arith.constant 0 : index
    %c0_7 = arith.constant 0 : index
    %6 = vector.load %arg1[%c0_6, %c0_7] : memref<256x128xf32, #tpu.memory_space<vmem>>, vector<256x128xf32>
    %c0_8 = arith.constant 0 : index
    %c0_9 = arith.constant 0 : index
    %7 = vector.load %arg2[%c0_8, %c0_9] : memref<128x128xf32, #tpu.memory_space<vmem>>, vector<128x128xf32>
    %cst = arith.constant dense<0.000000e+00> : vector<256x128xf32>
    %8 = tpu.matmul %6, %7, %cst {dimension_numbers = #tpu.dot_dimension_numbers<[1], [0], [0], [1], [0, 0, 1, 1], [], []>} : vector<256x128xf32>, vector<128x128xf32>, vector<256x128xf32> -> vector<256x128xf32>
    %9 = vector.broadcast %0 : vector<1x128xf32> to vector<256x128xf32>
    %10 = arith.addf %8, %9 : vector<256x128xf32>
    %cst_10 = arith.constant 5.000000e-01 : f32
    %11 = vector.broadcast %cst_10 : f32 to vector<256x128xf32>
    %12 = arith.mulf %11, %10 : vector<256x128xf32>
    %cst_11 = arith.constant 0.707106769 : f32
    %13 = vector.broadcast %cst_11 : f32 to vector<256x128xf32>
    %14 = arith.mulf %10, %13 : vector<256x128xf32>
    %15 = math.erf %14 : vector<256x128xf32>
    %cst_12 = arith.constant 1.000000e+00 : f32
    %16 = vector.broadcast %cst_12 : f32 to vector<256x128xf32>
    %17 = arith.addf %16, %15 : vector<256x128xf32>
    %18 = arith.mulf %12, %17 : vector<256x128xf32>
    %cst_13 = arith.constant dense<0.000000e+00> : vector<256xf32>
    %19 = vector.multi_reduction <add>, %18, %cst_13 [1] : vector<256x128xf32> to vector<256xf32>
    %20 = vector.shape_cast %19 : vector<256xf32> to vector<256x1xf32>
    %21 = arith.mulf %18, %18 : vector<256x128xf32>
    %cst_14 = arith.constant dense<0.000000e+00> : vector<256xf32>
    %22 = vector.multi_reduction <add>, %21, %cst_14 [1] : vector<256x128xf32> to vector<256xf32>
    %23 = vector.shape_cast %22 : vector<256xf32> to vector<256x1xf32>
    %cst_15 = arith.constant 7.812500e-03 : f32
    %24 = vector.broadcast %cst_15 : f32 to vector<256x1xf32>
    %25 = arith.mulf %20, %24 : vector<256x1xf32>
    %cst_16 = arith.constant 7.812500e-03 : f32
    %26 = vector.broadcast %cst_16 : f32 to vector<256x1xf32>
    %27 = arith.mulf %23, %26 : vector<256x1xf32>
    %28 = arith.mulf %25, %25 : vector<256x1xf32>
    %29 = arith.subf %27, %28 : vector<256x1xf32>
    %30 = vector.broadcast %25 : vector<256x1xf32> to vector<256x128xf32>
    %31 = arith.subf %18, %30 : vector<256x128xf32>
    %cst_17 = arith.constant 9.99999974E-6 : f32
    %32 = vector.broadcast %cst_17 : f32 to vector<256x1xf32>
    %33 = arith.addf %29, %32 : vector<256x1xf32>
    %34 = math.rsqrt %33 : vector<256x1xf32>
    %35 = vector.broadcast %34 : vector<256x1xf32> to vector<256x128xf32>
    %36 = arith.mulf %31, %35 : vector<256x128xf32>
    %37 = vector.broadcast %1 : vector<1x128xf32> to vector<256x128xf32>
    %38 = arith.mulf %36, %37 : vector<256x128xf32>
    %39 = vector.broadcast %2 : vector<1x128xf32> to vector<256x128xf32>
    %40 = arith.addf %38, %39 : vector<256x128xf32>
    %c0_18 = arith.constant 0 : index
    %c0_19 = arith.constant 0 : index
    %41 = vector.load %arg3[%c0_18, %c0_19] : memref<128x128xf32, #tpu.memory_space<vmem>>, vector<128x128xf32>
    %cst_20 = arith.constant dense<0.000000e+00> : vector<256x128xf32>
    %42 = tpu.matmul %40, %41, %cst_20 {dimension_numbers = #tpu.dot_dimension_numbers<[1], [0], [0], [1], [0, 0, 1, 1], [], []>} : vector<256x128xf32>, vector<128x128xf32>, vector<256x128xf32> -> vector<256x128xf32>
    %43 = vector.broadcast %3 : vector<1x128xf32> to vector<256x128xf32>
    %44 = arith.addf %42, %43 : vector<256x128xf32>
    %cst_21 = arith.constant 5.000000e-01 : f32
    %45 = vector.broadcast %cst_21 : f32 to vector<256x128xf32>
    %46 = arith.mulf %45, %44 : vector<256x128xf32>
    %cst_22 = arith.constant 0.707106769 : f32
    %47 = vector.broadcast %cst_22 : f32 to vector<256x128xf32>
    %48 = arith.mulf %44, %47 : vector<256x128xf32>
    %49 = math.erf %48 : vector<256x128xf32>
    %cst_23 = arith.constant 1.000000e+00 : f32
    %50 = vector.broadcast %cst_23 : f32 to vector<256x128xf32>
    %51 = arith.addf %50, %49 : vector<256x128xf32>
    %52 = arith.mulf %46, %51 : vector<256x128xf32>
    %cst_24 = arith.constant dense<0.000000e+00> : vector<256xf32>
    %53 = vector.multi_reduction <add>, %52, %cst_24 [1] : vector<256x128xf32> to vector<256xf32>
    %54 = vector.shape_cast %53 : vector<256xf32> to vector<256x1xf32>
    %55 = arith.mulf %52, %52 : vector<256x128xf32>
    %cst_25 = arith.constant dense<0.000000e+00> : vector<256xf32>
    %56 = vector.multi_reduction <add>, %55, %cst_25 [1] : vector<256x128xf32> to vector<256xf32>
    %57 = vector.shape_cast %56 : vector<256xf32> to vector<256x1xf32>
    %cst_26 = arith.constant 7.812500e-03 : f32
    %58 = vector.broadcast %cst_26 : f32 to vector<256x1xf32>
    %59 = arith.mulf %54, %58 : vector<256x1xf32>
    %cst_27 = arith.constant 7.812500e-03 : f32
    %60 = vector.broadcast %cst_27 : f32 to vector<256x1xf32>
    %61 = arith.mulf %57, %60 : vector<256x1xf32>
    %62 = arith.mulf %59, %59 : vector<256x1xf32>
    %63 = arith.subf %61, %62 : vector<256x1xf32>
    %64 = vector.broadcast %59 : vector<256x1xf32> to vector<256x128xf32>
    %65 = arith.subf %52, %64 : vector<256x128xf32>
    %cst_28 = arith.constant 9.99999974E-6 : f32
    %66 = vector.broadcast %cst_28 : f32 to vector<256x1xf32>
    %67 = arith.addf %63, %66 : vector<256x1xf32>
    %68 = math.rsqrt %67 : vector<256x1xf32>
    %69 = vector.broadcast %68 : vector<256x1xf32> to vector<256x128xf32>
    %70 = arith.mulf %65, %69 : vector<256x128xf32>
    %71 = vector.broadcast %4 : vector<1x128xf32> to vector<256x128xf32>
    %72 = arith.mulf %70, %71 : vector<256x128xf32>
    %73 = vector.broadcast %5 : vector<1x128xf32> to vector<256x128xf32>
    %74 = arith.addf %72, %73 : vector<256x128xf32>
    %c0_29 = arith.constant 0 : index
    %c0_30 = arith.constant 0 : index
    %75 = vector.load %arg4[%c0_29, %c0_30] : memref<128x128xf32, #tpu.memory_space<vmem>>, vector<128x128xf32>
    %cst_31 = arith.constant dense<0.000000e+00> : vector<256x128xf32>
    %76 = tpu.matmul %74, %75, %cst_31 {dimension_numbers = #tpu.dot_dimension_numbers<[1], [0], [0], [1], [0, 0, 1, 1], [], []>} : vector<256x128xf32>, vector<128x128xf32>, vector<256x128xf32> -> vector<256x128xf32>
    %c0_32 = arith.constant 0 : index
    %c0_33 = arith.constant 0 : index
    %77 = vector.load %arg6[%c0_32, %c0_33] : memref<1x128xf32, #tpu.memory_space<vmem>>, vector<1x128xf32>
    %78 = vector.broadcast %77 : vector<1x128xf32> to vector<256x128xf32>
    %79 = arith.addf %76, %78 : vector<256x128xf32>
    %c0_34 = arith.constant 0 : index
    %c0_35 = arith.constant 0 : index
    %80 = vector.load %arg1[%c0_34, %c0_35] : memref<256x128xf32, #tpu.memory_space<vmem>>, vector<256x128xf32>
    %81 = arith.addf %79, %80 : vector<256x128xf32>
    %cst_36 = arith.constant 5.000000e-01 : f32
    %82 = vector.broadcast %cst_36 : f32 to vector<256x128xf32>
    %83 = arith.mulf %82, %81 : vector<256x128xf32>
    %c0_37 = arith.constant 0 : index
    %c0_38 = arith.constant 0 : index
    %84 = vector.load %arg7[%c0_37, %c0_38] : memref<256x128xf32, #tpu.memory_space<vmem>>, vector<256x128xf32>
    tpu.vector_store %arg7[%c0_37, %c0_38], %83 {strides = array<i32>} : memref<256x128xf32, #tpu.memory_space<vmem>>, vector<256x128xf32>,
    return
  }
  func.func @transform_0(%arg0: i32) -> (i32, i32) {
    %c0_i32 = arith.constant 0 : i32
    %c0_i32_0 = arith.constant 0 : i32
    return %arg0, %c0_i32 : i32, i32
  }
  func.func @transform_1(%arg0: i32) -> (i32, i32) {
    %c0_i32 = arith.constant 0 : i32
    %c0_i32_0 = arith.constant 0 : i32
    %c0_i32_1 = arith.constant 0 : i32
    return %c0_i32, %c0_i32_0 : i32, i32
  }
  func.func @transform_2(%arg0: i32) -> (i32, i32) {
    %c0_i32 = arith.constant 0 : i32
    %c0_i32_0 = arith.constant 0 : i32
    %c0_i32_1 = arith.constant 0 : i32
    return %c0_i32, %c0_i32_0 : i32, i32
  }
  func.func @transform_3(%arg0: i32) -> (i32, i32) {
    %c0_i32 = arith.constant 0 : i32
    %c0_i32_0 = arith.constant 0 : i32
    %c0_i32_1 = arith.constant 0 : i32
    return %c0_i32, %c0_i32_0 : i32, i32
  }
  func.func @transform_4(%arg0: i32) -> (i32, i32) {
    %c0_i32 = arith.constant 0 : i32
    %c0_i32_0 = arith.constant 0 : i32
    %c0_i32_1 = arith.constant 0 : i32
    return %c0_i32, %c0_i32_0 : i32, i32
  }
  func.func @transform_5(%arg0: i32) -> (i32, i32) {
    %c0_i32 = arith.constant 0 : i32
    %c0_i32_0 = arith.constant 0 : i32
    %c0_i32_1 = arith.constant 0 : i32
    return %c0_i32, %c0_i32_0 : i32, i32
  }
  func.func @transform_6(%arg0: i32) -> (i32, i32) {
    %c0_i32 = arith.constant 0 : i32
    %c0_i32_0 = arith.constant 0 : i32
    return %arg0, %c0_i32 : i32, i32
  }
}

</mosaic_0001>

<llo_original>
// kernel: tpu_custom_call.1
$region0: #{tpu_custom_call.1}
  #allocation0 [shape = 'u32[]', space=smem, size = 0x4, offset = 0x4, fixed_abs, tag = 'smem constant byte address 0x4 - core index']
  #allocation1 [shape = 'u32[144,128]{1,0:T(1,128)}', space=vmem, size = 0x12000, scoped, tag = 'internal scratch']
  %s0 = inlined_call_operand.hbm [shape: f32[500,128], index: 0, kind: input, shape index: {}]
  %s1 = inlined_call_operand.hbm [shape: f32[128,128], index: 1, kind: input, shape index: {}]
  %s2 = inlined_call_operand.hbm [shape: f32[128,128], index: 2, kind: input, shape index: {}]
  %s3 = inlined_call_operand.hbm [shape: f32[128,128], index: 3, kind: input, shape index: {}]
  %s4 = inlined_call_operand.vmem [shape: f32[6,128], index: 4, kind: input, shape index: {}]
  %s5 = inlined_call_operand.vmem [shape: f32[1,128], index: 5, kind: input, shape index: {}]
  %s6 = inlined_call_operand.hbm [shape: f32[500,128], index: 6, kind: output, shape index: {}]
  %s7 = sld [smem:[#allocation0]]
  $region73: #{tpu_custom_call.1} parent=0
    _
  %s9 = ssub.s32 1, %s7
  %s10 = scalar_select 0, %s9, %s7
  $region1: #{tpu_custom_call.1} parent=0
    #allocation2 [shape = 'u8[262144]{0}', space=vmem, size = 0x40000, scoped, tag = 'input window, operand 0']
    #allocation3 [shape = 's32[2]{0}', space=sflag, size = 0x8, scoped, tag = 'scoped memory for tpu_custom_call.1']
    #allocation4 [shape = 's32[2]{0}', space=sflag, size = 0x8, scoped, tag = 'scoped memory for tpu_custom_call.1']
    #allocation5 [shape = 'u8[65536]{0}', space=vmem, size = 0x10000, scoped, tag = 'input window, operand 1, single buffered']
    #allocation6 [shape = 's32[1]{0}', space=sflag, size = 0x4, scoped, tag = 'scoped memory for tpu_custom_call.1']
    #allocation7 [shape = 'u8[65536]{0}', space=vmem, size = 0x10000, scoped, tag = 'input window, operand 2, single buffered']
    #allocation8 [shape = 'u8[65536]{0}', space=vmem, size = 0x10000, scoped, tag = 'input window, operand 3, single buffered']
    #allocation9 [shape = 's32[1]{0}', space=sflag, size = 0x4, scoped, tag = 'scoped memory for tpu_custom_call.1']
    #allocation10 [shape = 'u8[262144]{0}', space=vmem, size = 0x40000, scoped, tag = 'output window, operand 0']
    %11 = vsyncpa [#allocation3], 0
    %s12 = scalar_lea.sflag [#allocation3], 1
    %13 = vsyncpa %s12, 0
    %14 = vsyncpa [#allocation6], 0
    %15 = vsyncpa [#allocation9], 0
    %16 = vsyncpa [#allocation4], 0
    %s17 = scalar_lea.sflag [#allocation4], 1
    %18 = vsyncpa %s17, 0
    loop: start=0, step=1, limit=4
    $region2: #{tpu_custom_call.1} parent=1 // loop_pre_header
      _
    $region3: #{tpu_custom_call.1} parent=1 // loop_header
      %s20 = sphi 0, %s24
      %p21 = scmp.ge.s32.totalorder %s20, 4
      %s30 = sphi 0, %s32
      %s33 = sphi 0, %s30
      %s34 = sphi 0, %s33
      %s50 = sphi 0, %s34
      %s54 = sphi 0, %s54
      %s56 = sphi 0, %s54
      %s57 = sphi 0, %s56
      %s71 = sphi 0, %s57
      %s75 = sphi 0, %s75
      %s77 = sphi 0, %s75
      %s78 = sphi 0, %s77
      %s92 = sphi 0, %s78
      %s96 = sphi 0, %s96
      %s98 = sphi 0, %s96
      %s99 = sphi 0, %s98
      %s113 = sphi 0, %s99
      %s117 = sphi 0, %s117
      %s119 = sphi 0, %s117
      %s120 = sphi 0, %s119
      %s134 = sphi 0, %s120
      %s138 = sphi 0, %s138
      %s140 = sphi 0, %s138
      %s141 = sphi 0, %s140
      %s155 = sphi 0, %s141
      %s161 = sphi 0, %s163
      %s164 = sphi 0, %s161
      %s165 = sphi 0, %s164
      %s181 = sphi 0, %s165
    $region4: #{tpu_custom_call.1} parent=1 // loop_header_branch
      %23 = sbr.rel (%p21) target = $region8
    $region5: #{tpu_custom_call.1} parent=1 // loop_body
      %s25 = ssub.s32 %s20, 1
      %s26 = ssub.s32 %s20, 2
      %s27 = sadd.s32 %s20, 1
      %s28 = ssub.s32 %s20, %s27
      %p29 = scmp.eq.s32.totalorder %s28, 0
      %s31 = sadd.s32 %s30, 1
      %s32 = scalar_select %p29, %s30, %s31
      %p35 = pneg %p29
      %p36 = scmp.eq.s32.totalorder %s20, 1
      %p37 = por %p35, %p36
      %p38 = scmp.ne.s32.totalorder %s30, %s33
      %p39 = scmp.eq.s32.totalorder %s20, 0
      %p40 = por %p38, %p39
      %p41 = scmp.ne.s32.totalorder %s30, %s33
      %p42 = scmp.eq.s32.totalorder %s25, 1
      %p43 = por %p41, %p42
      %p44 = scmp.ne.s32.totalorder %s33, %s34
      %p45 = scmp.eq.s32.totalorder %s25, 0
      %p46 = por %p44, %p45
      %p47 = scmp.ne.s32.totalorder %s33, %s34
      %p48 = scmp.eq.s32.totalorder %s26, 1
      %p49 = por %p47, %p48
      %p51 = scmp.ne.s32.totalorder %s34, %s50
      %p52 = scmp.eq.s32.totalorder %s26, 0
      %p53 = por %p51, %p52
      %s55 = sadd.s32 %s54, 1
      %p58 = scmp.eq.s32.totalorder %s20, 1
      %p59 = scmp.ne.s32.totalorder %s54, %s56
      %p60 = scmp.eq.s32.totalorder %s20, 0
      %p61 = por %p59, %p60
      %p62 = scmp.ne.s32.totalorder %s54, %s56
      %p63 = scmp.eq.s32.totalorder %s25, 1
      %p64 = por %p62, %p63
      %p65 = scmp.ne.s32.totalorder %s56, %s57
      %p66 = scmp.eq.s32.totalorder %s25, 0
      %p67 = por %p65, %p66
      %p68 = scmp.ne.s32.totalorder %s56, %s57
      %p69 = scmp.eq.s32.totalorder %s26, 1
      %p70 = por %p68, %p69
      %p72 = scmp.ne.s32.totalorder %s57, %s71
      %p73 = scmp.eq.s32.totalorder %s26, 0
      %p74 = por %p72, %p73
      %s76 = sadd.s32 %s75, 1
      %p79 = scmp.eq.s32.totalorder %s20, 1
      %p80 = scmp.ne.s32.totalorder %s75, %s77
      %p81 = scmp.eq.s32.totalorder %s20, 0
      %p82 = por %p80, %p81
      %p83 = scmp.ne.s32.totalorder %s75, %s77
      %p84 = scmp.eq.s32.totalorder %s25, 1
      %p85 = por %p83, %p84
      %p86 = scmp.ne.s32.totalorder %s77, %s78
      %p87 = scmp.eq.s32.totalorder %s25, 0
      %p88 = por %p86, %p87
      %p89 = scmp.ne.s32.totalorder %s77, %s78
      %p90 = scmp.eq.s32.totalorder %s26, 1
      %p91 = por %p89, %p90
      %p93 = scmp.ne.s32.totalorder %s78, %s92
      %p94 = scmp.eq.s32.totalorder %s26, 0
      %p95 = por %p93, %p94
      %s97 = sadd.s32 %s96, 1
      %p100 = scmp.eq.s32.totalorder %s20, 1
      %p101 = scmp.ne.s32.totalorder %s96, %s98
      %p102 = scmp.eq.s32.totalorder %s20, 0
      %p103 = por %p101, %p102
      %p104 = scmp.ne.s32.totalorder %s96, %s98
      %p105 = scmp.eq.s32.totalorder %s25, 1
      %p106 = por %p104, %p105
      %p107 = scmp.ne.s32.totalorder %s98, %s99
      %p108 = scmp.eq.s32.totalorder %s25, 0
      %p109 = por %p107, %p108
      %p110 = scmp.ne.s32.totalorder %s98, %s99
      %p111 = scmp.eq.s32.totalorder %s26, 1
      %p112 = por %p110, %p111
      %p114 = scmp.ne.s32.totalorder %s99, %s113
      %p115 = scmp.eq.s32.totalorder %s26, 0
      %p116 = por %p114, %p115
      %s118 = sadd.s32 %s117, 1
      %p121 = scmp.eq.s32.totalorder %s20, 1
      %p122 = scmp.ne.s32.totalorder %s117, %s119
      %p123 = scmp.eq.s32.totalorder %s20, 0
      %p124 = por %p122, %p123
      %p125 = scmp.ne.s32.totalorder %s117, %s119
      %p126 = scmp.eq.s32.totalorder %s25, 1
      %p127 = por %p125, %p126
      %p128 = scmp.ne.s32.totalorder %s119, %s120
      %p129 = scmp.eq.s32.totalorder %s25, 0
      %p130 = por %p128, %p129
      %p131 = scmp.ne.s32.totalorder %s119, %s120
      %p132 = scmp.eq.s32.totalorder %s26, 1
      %p133 = por %p131, %p132
      %p135 = scmp.ne.s32.totalorder %s120, %s134
      %p136 = scmp.eq.s32.totalorder %s26, 0
      %p137 = por %p135, %p136
      %s139 = sadd.s32 %s138, 1
      %p142 = scmp.eq.s32.totalorder %s20, 1
      %p143 = scmp.ne.s32.totalorder %s138, %s140
      %p144 = scmp.eq.s32.totalorder %s20, 0
      %p145 = por %p143, %p144
      %p146 = scmp.ne.s32.totalorder %s138, %s140
      %p147 = scmp.eq.s32.totalorder %s25, 1
      %p148 = por %p146, %p147
      %p149 = scmp.ne.s32.totalorder %s140, %s141
      %p150 = scmp.eq.s32.totalorder %s25, 0
      %p151 = por %p149, %p150
      %p152 = scmp.ne.s32.totalorder %s140, %s141
      %p153 = scmp.eq.s32.totalorder %s26, 1
      %p154 = por %p152, %p153
      %p156 = scmp.ne.s32.totalorder %s141, %s155
      %p157 = scmp.eq.s32.totalorder %s26, 0
      %p158 = por %p156, %p157
      %s159 = ssub.s32 %s20, %s27
      %p160 = scmp.eq.s32.totalorder %s159, 0
      %s162 = sadd.s32 %s161, 1
      %s163 = scalar_select %p160, %s161, %s162
      %p166 = pneg %p160
      %p167 = scmp.eq.s32.totalorder %s20, 1
      %p168 = por %p166, %p167
      %p169 = scmp.ne.s32.totalorder %s161, %s164
      %p170 = scmp.eq.s32.totalorder %s20, 0
      %p171 = por %p169, %p170
      %p172 = scmp.ne.s32.totalorder %s161, %s164
      %p173 = scmp.eq.s32.totalorder %s25, 1
      %p174 = por %p172, %p173
      %p175 = scmp.ne.s32.totalorder %s164, %s165
      %p176 = scmp.eq.s32.totalorder %s25, 0
      %p177 = por %p175, %p176
      %p178 = scmp.ne.s32.totalorder %s164, %s165
      %p179 = scmp.eq.s32.totalorder %s26, 1
      %p180 = por %p178, %p179
      %p182 = scmp.ne.s32.totalorder %s165, %s181
      %p183 = scmp.eq.s32.totalorder %s26, 0
      %p184 = por %p182, %p183
      %p185 = scmp.le.s32.totalorder 1, %s20
      %p186 = scmp.lt.s32.totalorder %s20, 3
      %p187 = pnand %p185, %p186
      %p188 = pneg %p187
      // Predicated region
      $region9: #{tpu_custom_call.1} parent=5 // pred_check
        _
      $region10: #{tpu_custom_call.1} parent=5 // pred_check_branch
        %190 = sbr.rel (%p187) target = $region12
      $region11: #{tpu_custom_call.1} parent=5 // pred_region
        %s191 = ssub.s32 %s20, 1
        // Predicated region
        $region13: #{tpu_custom_call.1} parent=11 // pred_check
          %p192 = pneg %p67
        $region14: #{tpu_custom_call.1} parent=11 // pred_check_branch
          %194 = sbr.rel (%p192) target = $region16
        $region15: #{tpu_custom_call.1} parent=11 // pred_region
          %s196 = ssub.s32 2048, 2048
          %197 = vsyncadd [#allocation6], %s196
          %s198 = sshll.u32 [#allocation5], 4
          %s199 = int_to_ptr.vmem [resolvable:$true] %s198
          %204 = dma.hbm_to_vmem [thread:$0]  %s1, 2048, %s199, [#allocation6], 128, 128, 8
        $region16: #{tpu_custom_call.1} parent=11 // pred_fallthru
          _
        // Predicated region
        $region17: #{tpu_custom_call.1} parent=11 // pred_check
          %p205 = pneg %p88
        $region18: #{tpu_custom_call.1} parent=11 // pred_check_branch
          %207 = sbr.rel (%p205) target = $region20
        $region19: #{tpu_custom_call.1} parent=11 // pred_region
          %s209 = ssub.s32 2048, 2048
          %210 = vsyncadd [#allocation6], %s209
          %s211 = sshll.u32 [#allocation7], 4
          %s212 = int_to_ptr.vmem [resolvable:$true] %s211
          %217 = dma.hbm_to_vmem [thread:$0]  %s2, 2048, %s212, [#allocation6], 128, 128, 8
        $region20: #{tpu_custom_call.1} parent=11 // pred_fallthru
          _
        // Predicated region
        $region21: #{tpu_custom_call.1} parent=11 // pred_check
          %p218 = pneg %p109
        $region22: #{tpu_custom_call.1} parent=11 // pred_check_branch
          %220 = sbr.rel (%p218) target = $region24
        $region23: #{tpu_custom_call.1} parent=11 // pred_region
          %s222 = ssub.s32 2048, 2048
          %223 = vsyncadd [#allocation9], %s222
          %s224 = sshll.u32 [#allocation8], 4
          %s225 = int_to_ptr.vmem [resolvable:$true] %s224
          %230 = dma.hbm_to_vmem [thread:$0]  %s3, 2048, %s225, [#allocation9], 128, 128, 8
        $region24: #{tpu_custom_call.1} parent=11 // pred_fallthru
          _
        // Predicated region
        $region25: #{tpu_custom_call.1} parent=11 // pred_check
          %p231 = pneg %p130
        $region26: #{tpu_custom_call.1} parent=11 // pred_check_branch
          %233 = sbr.rel (%p231) target = $region28
        $region27: #{tpu_custom_call.1} parent=11 // pred_region
          _
        $region28: #{tpu_custom_call.1} parent=11 // pred_fallthru
          _
        // Predicated region
        $region29: #{tpu_custom_call.1} parent=11 // pred_check
          %p234 = pneg %p151
        $region30: #{tpu_custom_call.1} parent=11 // pred_check_branch
          %236 = sbr.rel (%p234) target = $region32
        $region31: #{tpu_custom_call.1} parent=11 // pred_region
          _
        $region32: #{tpu_custom_call.1} parent=11 // pred_fallthru
          _
      $region12: #{tpu_custom_call.1} parent=5 // pred_fallthru
        _
      %p237 = scmp.lt.s32.totalorder %s20, 2
      // Predicated region
      $region33: #{tpu_custom_call.1} parent=5 // pred_check
        %p238 = pneg %p237
      $region34: #{tpu_custom_call.1} parent=5 // pred_check_branch
        %240 = sbr.rel (%p238) target = $region36
      $region35: #{tpu_custom_call.1} parent=5 // pred_region
        // Predicated region
        $region37: #{tpu_custom_call.1} parent=35 // pred_check
          %p241 = pneg %p40
        $region38: #{tpu_custom_call.1} parent=35 // pred_check_branch
          %243 = sbr.rel (%p241) target = $region40
        $region39: #{tpu_custom_call.1} parent=35 // pred_region
          %s244 = sand.u32 %s30, 1
          %s245 = scalar_lea.sflag [#allocation3], %s244
          %s246 = sand.u32 %s30, 1
          %s247 = smul.addr %s246, 256
          %s248 = scalar_lea.vmem [#allocation2], %s247
          %s249 = smul.u32 32, %s20
          %s250 = ssub.s32 63, %s249
          %p251 = scmp.lt.s32.totalorder %s250, 32
          %s252 = scalar_select %p251, %s250, 32
          %s253 = smul.u32 128, %s252
          %s255 = ssub.s32 4096, %s253
          %256 = vsyncadd %s245, %s255
          %p257 = scmp.ne.s32.totalorder 0, %s253
          %s258 = smul.addr %s249, 128
          %s259 = scalar_lea.hbm %s0, %s258
          %s260 = smul.u32 8, %s252
          %s261 = sshll.u32 %s248, 4
          %s262 = int_to_ptr.vmem [resolvable:$true] %s261
          %s263 = sshll.u32 %s260, 4
          %267 = dma.hbm_to_vmem [thread:$0]  (%p257), %s259, %s263, %s262, %s245, 128, 128, 8
        $region40: #{tpu_custom_call.1} parent=35 // pred_fallthru
          _
      $region36: #{tpu_custom_call.1} parent=5 // pred_fallthru
        _
      %p268 = scmp.le.s32.totalorder 1, %s20
      %p269 = scmp.lt.s32.totalorder %s20, 3
      %p270 = pnand %p268, %p269
      %p271 = pneg %p270
      // Predicated region
      $region41: #{tpu_custom_call.1} parent=5 // pred_check
        _
      $region42: #{tpu_custom_call.1} parent=5 // pred_check_branch
        %273 = sbr.rel (%p270) target = $region44
      $region43: #{tpu_custom_call.1} parent=5 // pred_region
        %s274 = ssub.s32 %s20, 1
        %s275 = sand.u32 %s33, 1
        %s276 = scalar_lea.sflag [#allocation3], %s275
        %s277 = sand.u32 %s33, 1
        %s278 = smul.addr %s277, 256
        %s279 = scalar_lea.vmem [#allocation2], %s278
        // Predicated region
        $region45: #{tpu_custom_call.1} parent=43 // pred_check
          %p280 = pneg %p46
        $region46: #{tpu_custom_call.1} parent=43 // pred_check_branch
          %282 = sbr.rel (%p280) target = $region48
        $region47: #{tpu_custom_call.1} parent=43 // pred_region
          %283 = dma.done %s276, 4096
        $region48: #{tpu_custom_call.1} parent=43 // pred_fallthru
          _
        // Predicated region
        $region49: #{tpu_custom_call.1} parent=43 // pred_check
          %p284 = pneg %p67
        $region50: #{tpu_custom_call.1} parent=43 // pred_check_branch
          %286 = sbr.rel (%p284) target = $region52
        $region51: #{tpu_custom_call.1} parent=43 // pred_region
          %287 = dma.done [#allocation6], 2048
        $region52: #{tpu_custom_call.1} parent=43 // pred_fallthru
          _
        // Predicated region
        $region53: #{tpu_custom_call.1} parent=43 // pred_check
          %p288 = pneg %p88
        $region54: #{tpu_custom_call.1} parent=43 // pred_check_branch
          %290 = sbr.rel (%p288) target = $region56
        $region55: #{tpu_custom_call.1} parent=43 // pred_region
          %291 = dma.done [#allocation6], 2048
        $region56: #{tpu_custom_call.1} parent=43 // pred_fallthru
          _
        // Predicated region
        $region57: #{tpu_custom_call.1} parent=43 // pred_check
          %p292 = pneg %p109
        $region58: #{tpu_custom_call.1} parent=43 // pred_check_branch
          %294 = sbr.rel (%p292) target = $region60
        $region59: #{tpu_custom_call.1} parent=43 // pred_region
          %295 = dma.done [#allocation9], 2048
        $region60: #{tpu_custom_call.1} parent=43 // pred_fallthru
          _
        %s296 = sand.u32 %s33, 1
        %s297 = scalar_lea.sflag [#allocation3], %s296
        %s298 = sand.u32 %s33, 1
        %s299 = smul.addr %s298, 256
        %s300 = scalar_lea.vmem [#allocation2], %s299
        %p301 = pneg %p46
        %p302 = pneg %p43
        %p303 = pneg %p67
        %p304 = pneg %p64
        %p305 = pneg %p88
        %p306 = pneg %p85
        %p307 = pneg %p109
        %p308 = pneg %p106
        %p309 = pneg %p130
        %p310 = pneg %p127
        %p311 = pneg %p151
        %p312 = pneg %p148
        %p313 = pneg %p177
        %p314 = pneg %p174
        %s315 = sand.u32 %s164, 1
        %s316 = scalar_lea.sflag [#allocation4], %s315
        %s317 = sand.u32 %s164, 1
        %s318 = smul.addr %s317, 256
        %s319 = scalar_lea.vmem [#allocation10], %s318
        %s320 = smul.u32 32, %s25
        %s321 = ssub.s32 63, %s320
        %p322 = scmp.lt.s32.totalorder %s321, 32
        %s323 = scalar_select %p322, %s321, 32
        %s324 = smul.u32 128, %s323
        %s325 = smul.u32 32, %s25
        %s326 = ssub.s32 63, %s325
        %p327 = scmp.lt.s32.totalorder %s326, 32
        %s328 = scalar_select %p327, %s326, 32
        %s329 = smul.u32 128, %s328
        %v330 = vld [vmem:[%s4] sm:$0x1]
        %v331 = vld [vmem:[%s4 + $0x1] sm:$0x1]
        %v332 = vld [vmem:[%s4 + $0x2] sm:$0x1]
        %v333 = vld [vmem:[%s4 + $0x3] sm:$0x1]
        %v334 = vld [vmem:[%s4 + $0x4] sm:$0x1]
        %v335 = vld [vmem:[%s4 + $0x5] sm:$0x1]
        %v336 = vld [vmem:[%s279] sm:$0xff]
        %v337 = vld [vmem:[%s279 + $0x8] sm:$0xff]
        %v338 = vld [vmem:[%s279 + $0x10] sm:$0xff]
        %v339 = vld [vmem:[%s279 + $0x18] sm:$0xff]
        %v340 = vld [vmem:[%s279 + $0x20] sm:$0xff]
        %v341 = vld [vmem:[%s279 + $0x28] sm:$0xff]
        %v342 = vld [vmem:[%s279 + $0x30] sm:$0xff]
        %v343 = vld [vmem:[%s279 + $0x38] sm:$0xff]
        %v344 = vld [vmem:[%s279 + $0x40] sm:$0xff]
        %v345 = vld [vmem:[%s279 + $0x48] sm:$0xff]
        %v346 = vld [vmem:[%s279 + $0x50] sm:$0xff]
        %v347 = vld [vmem:[%s279 + $0x58] sm:$0xff]
        %v348 = vld [vmem:[%s279 + $0x60] sm:$0xff]
        %v349 = vld [vmem:[%s279 + $0x68] sm:$0xff]
        %v350 = vld [vmem:[%s279 + $0x70] sm:$0xff]
        %v351 = vld [vmem:[%s279 + $0x78] sm:$0xff]
        %v352 = vld [vmem:[%s279 + $0x80] sm:$0xff]
        %v353 = vld [vmem:[%s279 + $0x88] sm:$0xff]
        %v354 = vld [vmem:[%s279 + $0x90] sm:$0xff]
        %v355 = vld [vmem:[%s279 + $0x98] sm:$0xff]
        %v356 = vld [vmem:[%s279 + $0xa0] sm:$0xff]
        %v357 = vld [vmem:[%s279 + $0xa8] sm:$0xff]
        %v358 = vld [vmem:[%s279 + $0xb0] sm:$0xff]
        %v359 = vld [vmem:[%s279 + $0xb8] sm:$0xff]
        %v360 = vld [vmem:[%s279 + $0xc0] sm:$0xff]
        %v361 = vld [vmem:[%s279 + $0xc8] sm:$0xff]
        %v362 = vld [vmem:[%s279 + $0xd0] sm:$0xff]
        %v363 = vld [vmem:[%s279 + $0xd8] sm:$0xff]
        %v364 = vld [vmem:[%s279 + $0xe0] sm:$0xff]
        %v365 = vld [vmem:[%s279 + $0xe8] sm:$0xff]
        %v366 = vld [vmem:[%s279 + $0xf0] sm:$0xff]
        %v367 = vld [vmem:[%s279 + $0xf8] sm:$0xff]
        %v368 = vld [vmem:[#allocation5] sm:$0xff]
        %v369 = vld [vmem:[#allocation5 + $0x8] sm:$0xff]
        %v370 = vld [vmem:[#allocation5 + $0x10] sm:$0xff]
        %v371 = vld [vmem:[#allocation5 + $0x18] sm:$0xff]
        %v372 = vld [vmem:[#allocation5 + $0x20] sm:$0xff]
        %v373 = vld [vmem:[#allocation5 + $0x28] sm:$0xff]
        %v374 = vld [vmem:[#allocation5 + $0x30] sm:$0xff]
        %v375 = vld [vmem:[#allocation5 + $0x38] sm:$0xff]
        %v376 = vld [vmem:[#allocation5 + $0x40] sm:$0xff]
        %v377 = vld [vmem:[#allocation5 + $0x48] sm:$0xff]
        %v378 = vld [vmem:[#allocation5 + $0x50] sm:$0xff]
        %v379 = vld [vmem:[#allocation5 + $0x58] sm:$0xff]
        %v380 = vld [vmem:[#allocation5 + $0x60] sm:$0xff]
        %v381 = vld [vmem:[#allocation5 + $0x68] sm:$0xff]
        %v382 = vld [vmem:[#allocation5 + $0x70] sm:$0xff]
        %v383 = vld [vmem:[#allocation5 + $0x78] sm:$0xff]
        %v384 = vlaneseq
        %v385 = vshrl.u32 %v384, 7
        %v386 = vsub.s32 0, %v385
        %v387 = vrot.slane %v330, %v386
        %388 = vmatprep.subr.mxu0 0.0
        %389 = vmatpush1.msra.mxu0 %v368
        %390 = vmatprep.subr.mxu0 0.0
        %391 = vmatpush1.msra.mxu0 %v369
        %392 = vmatprep.subr.mxu0 0.0
        %393 = vmatpush1.msra.mxu0 %v370
        %394 = vmatprep.subr.mxu0 0.0
        %395 = vmatpush1.msra.mxu0 %v371
        %396 = vmatprep.subr.mxu0 0.0
        %397 = vmatpush1.msra.mxu0 %v372
        %398 = vmatprep.subr.mxu0 0.0
        %399 = vmatpush1.msra.mxu0 %v373
        %400 = vmatprep.subr.mxu0 0.0
        %401 = vmatpush1.msra.mxu0 %v374
        %402 = vmatprep.subr.mxu0 0.0
        %403 = vmatpush1.msra.mxu0 %v375
        %404 = vmatprep.subr.mxu0 0.0
        %405 = vmatpush1.msra.mxu0 %v376
        %406 = vmatprep.subr.mxu0 0.0
        %407 = vmatpush1.msra.mxu0 %v377
        %408 = vmatprep.subr.mxu0 0.0
        %409 = vmatpush1.msra.mxu0 %v378
        %410 = vmatprep.subr.mxu0 0.0
        %411 = vmatpush1.msra.mxu0 %v379
        %412 = vmatprep.subr.mxu0 0.0
        %413 = vmatpush1.msra.mxu0 %v380
        %414 = vmatprep.subr.mxu0 0.0
        %415 = vmatpush1.msra.mxu0 %v381
        %416 = vmatprep.subr.mxu0 0.0
        %417 = vmatpush1.msra.mxu0 %v382
        %418 = vmatprep.subr.mxu0 0.0
        %419 = vmatpush1.msra.mxu0 %v383
        %420 = vmatprep.subr.mxu0 0.0
        %421 = vmatpush1.msra.mxu0 0.0
        %422 = vmatprep.subr.mxu0 0.0
        %423 = vmatpush1.msra.mxu0 0.0
        %424 = vmatprep.subr.mxu0 0.0
        %425 = vmatpush1.msra.mxu0 0.0
        %426 = vmatprep.subr.mxu0 0.0
        %427 = vmatpush1.msra.mxu0 0.0
        %428 = vmatprep.subr.mxu0 0.0
        %429 = vmatpush1.msra.mxu0 0.0
        %430 = vmatprep.subr.mxu0 0.0
        %431 = vmatpush1.msra.mxu0 0.0
        %432 = vmatprep.subr.mxu0 0.0
        %433 = vmatpush1.msra.mxu0 0.0
        %434 = vmatprep.subr.mxu0 0.0
        %435 = vmatpush1.msra.mxu0 0.0
        %436 = vmatprep.subr.mxu0 0.0
        %437 = vmatpush1.msra.mxu0 0.0
        %438 = vmatprep.subr.mxu0 0.0
        %439 = vmatpush1.msra.mxu0 0.0
        %440 = vmatprep.subr.mxu0 0.0
        %441 = vmatpush1.msra.mxu0 0.0
        %442 = vmatprep.subr.mxu0 0.0
        %443 = vmatpush1.msra.mxu0 0.0
        %444 = vmatprep.subr.mxu0 0.0
        %445 = vmatpush1.msra.mxu0 0.0
        %446 = vmatprep.subr.mxu0 0.0
        %447 = vmatpush1.msra.mxu0 0.0
        %448 = vmatprep.subr.mxu0 0.0
        %449 = vmatpush1.msra.mxu0 0.0
        %450 = vmatprep.subr.mxu0 0.0
        %451 = vmatpush1.msra.mxu0 0.0
        %452 = vmatprep.mubr.f32.mxu0 0.0
        %453 = vmatmul.mubr.f32.gmra.mrb[0].mxu0 %v336
        %v454 = vpop.f32.mrb[0].mxu0
        %v455 = vadd.f32 %v387, %v454
        %v456 = vpop.f32.mrb[0].mxu0
        %457 = vmatprep.mubr.f32.mxu0 0.0
        %458 = vmatmul.mubr.f32.gmra.mrb[0].mxu0 %v337
        %v459 = vpop.f32.mrb[0].mxu0
        %v460 = vadd.f32 %v387, %v459
        %v461 = vpop.f32.mrb[0].mxu0
        %462 = vmatprep.mubr.f32.mxu0 0.0
        %463 = vmatmul.mubr.f32.gmra.mrb[0].mxu0 %v338
        %v464 = vpop.f32.mrb[0].mxu0
        %v465 = vadd.f32 %v387, %v464
        %v466 = vpop.f32.mrb[0].mxu0
        %467 = vmatprep.mubr.f32.mxu0 0.0
        %468 = vmatmul.mubr.f32.gmra.mrb[0].mxu0 %v339
        %v469 = vpop.f32.mrb[0].mxu0
        %v470 = vadd.f32 %v387, %v469
        %v471 = vpop.f32.mrb[0].mxu0
        %472 = vmatprep.mubr.f32.mxu0 0.0
        %473 = vmatmul.mubr.f32.gmra.mrb[0].mxu0 %v340
        %v474 = vpop.f32.mrb[0].mxu0
        %v475 = vadd.f32 %v387, %v474
        %v476 = vpop.f32.mrb[0].mxu0
        %477 = vmatprep.mubr.f32.mxu0 0.0
        %478 = vmatmul.mubr.f32.gmra.mrb[0].mxu0 %v341
        %v479 = vpop.f32.mrb[0].mxu0
        %v480 = vadd.f32 %v387, %v479
        %v481 = vpop.f32.mrb[0].mxu0
        %482 = vmatprep.mubr.f32.mxu0 0.0
        %483 = vmatmul.mubr.f32.gmra.mrb[0].mxu0 %v342
        %v484 = vpop.f32.mrb[0].mxu0
        %v485 = vadd.f32 %v387, %v484
        %v486 = vpop.f32.mrb[0].mxu0
        %487 = vmatprep.mubr.f32.mxu0 0.0
        %488 = vmatmul.mubr.f32.gmra.mrb[0].mxu0 %v343
        %v489 = vpop.f32.mrb[0].mxu0
        %v490 = vadd.f32 %v387, %v489
        %v491 = vpop.f32.mrb[0].mxu0
        %492 = vmatprep.mubr.f32.mxu0 0.0
        %493 = vmatmul.mubr.f32.gmra.mrb[0].mxu0 %v344
        %v494 = vpop.f32.mrb[0].mxu0
        %v495 = vadd.f32 %v387, %v494
        %v496 = vpop.f32.mrb[0].mxu0
        %497 = vmatprep.mubr.f32.mxu0 0.0
        %498 = vmatmul.mubr.f32.gmra.mrb[0].mxu0 %v345
        %v499 = vpop.f32.mrb[0].mxu0
        %v500 = vadd.f32 %v387, %v499
        %v501 = vpop.f32.mrb[0].mxu0
        %502 = vmatprep.mubr.f32.mxu0 0.0
        %503 = vmatmul.mubr.f32.gmra.mrb[0].mxu0 %v346
        %v504 = vpop.f32.mrb[0].mxu0
        %v505 = vadd.f32 %v387, %v504
        %v506 = vpop.f32.mrb[0].mxu0
        %507 = vmatprep.mubr.f32.mxu0 0.0
        %508 = vmatmul.mubr.f32.gmra.mrb[0].mxu0 %v347
        %v509 = vpop.f32.mrb[0].mxu0
        %v510 = vadd.f32 %v387, %v509
        %v511 = vpop.f32.mrb[0].mxu0
        %512 = vmatprep.mubr.f32.mxu0 0.0
        %513 = vmatmul.mubr.f32.gmra.mrb[0].mxu0 %v348
        %v514 = vpop.f32.mrb[0].mxu0
        %v515 = vadd.f32 %v387, %v514
        %v516 = vpop.f32.mrb[0].mxu0
        %517 = vmatprep.mubr.f32.mxu0 0.0
        %518 = vmatmul.mubr.f32.gmra.mrb[0].mxu0 %v349
        %v519 = vpop.f32.mrb[0].mxu0
        %v520 = vadd.f32 %v387, %v519
        %v521 = vpop.f32.mrb[0].mxu0
        %522 = vmatprep.mubr.f32.mxu0 0.0
        %523 = vmatmul.mubr.f32.gmra.mrb[0].mxu0 %v350
        %v524 = vpop.f32.mrb[0].mxu0
        %v525 = vadd.f32 %v387, %v524
        %v526 = vpop.f32.mrb[0].mxu0
        %527 = vmatprep.mubr.f32.mxu0 0.0
        %528 = vmatmul.mubr.f32.gmra.mrb[0].mxu0 %v351
        %v529 = vpop.f32.mrb[0].mxu0
        %v530 = vadd.f32 %v387, %v529
        %v531 = vpop.f32.mrb[0].mxu0
        %532 = vmatprep.mubr.f32.mxu0 0.0
        %533 = vmatmul.mubr.f32.gmra.mrb[0].mxu0 %v352
        %v534 = vpop.f32.mrb[0].mxu0
        %v535 = vadd.f32 %v387, %v534
        %v536 = vpop.f32.mrb[0].mxu0
        %537 = vmatprep.mubr.f32.mxu0 0.0
        %538 = vmatmul.mubr.f32.gmra.mrb[0].mxu0 %v353
        %v539 = vpop.f32.mrb[0].mxu0
        %v540 = vadd.f32 %v387, %v539
        %v541 = vpop.f32.mrb[0].mxu0
        %542 = vmatprep.mubr.f32.mxu0 0.0
        %543 = vmatmul.mubr.f32.gmra.mrb[0].mxu0 %v354
        %v544 = vpop.f32.mrb[0].mxu0
        %v545 = vadd.f32 %v387, %v544
        %v546 = vpop.f32.mrb[0].mxu0
        %547 = vmatprep.mubr.f32.mxu0 0.0
        %548 = vmatmul.mubr.f32.gmra.mrb[0].mxu0 %v355
        %v549 = vpop.f32.mrb[0].mxu0
        %v550 = vadd.f32 %v387, %v549
        %v551 = vpop.f32.mrb[0].mxu0
        %552 = vmatprep.mubr.f32.mxu0 0.0
        %553 = vmatmul.mubr.f32.gmra.mrb[0].mxu0 %v356
        %v554 = vpop.f32.mrb[0].mxu0
        %v555 = vadd.f32 %v387, %v554
        %v556 = vpop.f32.mrb[0].mxu0
        %557 = vmatprep.mubr.f32.mxu0 0.0
        %558 = vmatmul.mubr.f32.gmra.mrb[0].mxu0 %v357
        %v559 = vpop.f32.mrb[0].mxu0
        %v560 = vadd.f32 %v387, %v559
        %v561 = vpop.f32.mrb[0].mxu0
        %562 = vmatprep.mubr.f32.mxu0 0.0
        %563 = vmatmul.mubr.f32.gmra.mrb[0].mxu0 %v358
        %v564 = vpop.f32.mrb[0].mxu0
        %v565 = vadd.f32 %v387, %v564
        %v566 = vpop.f32.mrb[0].mxu0
        %567 = vmatprep.mubr.f32.mxu0 0.0
        %568 = vmatmul.mubr.f32.gmra.mrb[0].mxu0 %v359
        %v569 = vpop.f32.mrb[0].mxu0
        %v570 = vadd.f32 %v387, %v569
        %v571 = vpop.f32.mrb[0].mxu0
        %572 = vmatprep.mubr.f32.mxu0 0.0
        %573 = vmatmul.mubr.f32.gmra.mrb[0].mxu0 %v360
        %v574 = vpop.f32.mrb[0].mxu0
        %v575 = vadd.f32 %v387, %v574
        %v576 = vpop.f32.mrb[0].mxu0
        %577 = vmatprep.mubr.f32.mxu0 0.0
        %578 = vmatmul.mubr.f32.gmra.mrb[0].mxu0 %v361
        %v579 = vpop.f32.mrb[0].mxu0
        %v580 = vadd.f32 %v387, %v579
        %v581 = vpop.f32.mrb[0].mxu0
        %582 = vmatprep.mubr.f32.mxu0 0.0
        %583 = vmatmul.mubr.f32.gmra.mrb[0].mxu0 %v362
        %v584 = vpop.f32.mrb[0].mxu0
        %v585 = vadd.f32 %v387, %v584
        %v586 = vpop.f32.mrb[0].mxu0
        %587 = vmatprep.mubr.f32.mxu0 0.0
        %588 = vmatmul.mubr.f32.gmra.mrb[0].mxu0 %v363
        %v589 = vpop.f32.mrb[0].mxu0
        %v590 = vadd.f32 %v387, %v589
        %v591 = vpop.f32.mrb[0].mxu0
        %592 = vmatprep.mubr.f32.mxu0 0.0
        %593 = vmatmul.mubr.f32.gmra.mrb[0].mxu0 %v364
        %v594 = vpop.f32.mrb[0].mxu0
        %v595 = vadd.f32 %v387, %v594
        %v596 = vpop.f32.mrb[0].mxu0
        %597 = vmatprep.mubr.f32.mxu0 0.0
        %598 = vmatmul.mubr.f32.gmra.mrb[0].mxu0 %v365
        %v599 = vpop.f32.mrb[0].mxu0
        %v600 = vadd.f32 %v387, %v599
        %v601 = vpop.f32.mrb[0].mxu0
        %602 = vmatprep.mubr.f32.mxu0 0.0
        %603 = vmatmul.mubr.f32.gmra.mrb[0].mxu0 %v366
        %v604 = vpop.f32.mrb[0].mxu0
        %v605 = vadd.f32 %v387, %v604
        %v606 = vpop.f32.mrb[0].mxu0
        %607 = vmatprep.mubr.f32.mxu0 0.0
        %608 = vmatmul.mubr.f32.gmra.mrb[0].mxu0 %v367
        %v609 = vpop.f32.mrb[0].mxu0
        %v610 = vadd.f32 %v387, %v609
        %v611 = vpop.f32.mrb[0].mxu0
        %612 = vdwg.mxu0
        %v613 = vmul.f32 %v455, 0.5
        %v614 = vmul.f32 %v460, 0.5
        %v615 = vmul.f32 %v465, 0.5
        %v616 = vmul.f32 %v470, 0.5
        %v617 = vmul.f32 %v475, 0.5
        %v618 = vmul.f32 %v480, 0.5
        %v619 = vmul.f32 %v485, 0.5
        %v620 = vmul.f32 %v490, 0.5
        %v621 = vmul.f32 %v495, 0.5
        %v622 = vmul.f32 %v500, 0.5
        %v623 = vmul.f32 %v505, 0.5
        %v624 = vmul.f32 %v510, 0.5
        %v625 = vmul.f32 %v515, 0.5
        %v626 = vmul.f32 %v520, 0.5
        %v627 = vmul.f32 %v525, 0.5
        %v628 = vmul.f32 %v530, 0.5
        %v629 = vmul.f32 %v535, 0.5
        %v630 = vmul.f32 %v540, 0.5
        %v631 = vmul.f32 %v545, 0.5
        %v632 = vmul.f32 %v550, 0.5
        %v633 = vmul.f32 %v555, 0.5
        %v634 = vmul.f32 %v560, 0.5
        %v635 = vmul.f32 %v565, 0.5
        %v636 = vmul.f32 %v570, 0.5
        %v637 = vmul.f32 %v575, 0.5
        %v638 = vmul.f32 %v580, 0.5
        %v639 = vmul.f32 %v585, 0.5
        %v640 = vmul.f32 %v590, 0.5
        %v641 = vmul.f32 %v595, 0.5
        %v642 = vmul.f32 %v600, 0.5
        %v643 = vmul.f32 %v605, 0.5
        %v644 = vmul.f32 %v610, 0.5
        %v645 = vmul.f32 %v455, 0.70710677
        %v646 = vmul.f32 %v460, 0.70710677
        %v647 = vmul.f32 %v465, 0.70710677
        %v648 = vmul.f32 %v470, 0.70710677
        %v649 = vmul.f32 %v475, 0.70710677
        %v650 = vmul.f32 %v480, 0.70710677
        %v651 = vmul.f32 %v485, 0.70710677
        %v652 = vmul.f32 %v490, 0.70710677
        %v653 = vmul.f32 %v495, 0.70710677
        %v654 = vmul.f32 %v500, 0.70710677
        %v655 = vmul.f32 %v505, 0.70710677
        %v656 = vmul.f32 %v510, 0.70710677
        %v657 = vmul.f32 %v515, 0.70710677
        %v658 = vmul.f32 %v520, 0.70710677
        %v659 = vmul.f32 %v525, 0.70710677
        %v660 = vmul.f32 %v530, 0.70710677
        %v661 = vmul.f32 %v535, 0.70710677
        %v662 = vmul.f32 %v540, 0.70710677
        %v663 = vmul.f32 %v545, 0.70710677
        %v664 = vmul.f32 %v550, 0.70710677
        %v665 = vmul.f32 %v555, 0.70710677
        %v666 = vmul.f32 %v560, 0.70710677
        %v667 = vmul.f32 %v565, 0.70710677
        %v668 = vmul.f32 %v570, 0.70710677
        %v669 = vmul.f32 %v575, 0.70710677
        %v670 = vmul.f32 %v580, 0.70710677
        %v671 = vmul.f32 %v585, 0.70710677
        %v672 = vmul.f32 %v590, 0.70710677
        %v673 = vmul.f32 %v595, 0.70710677
        %v674 = vmul.f32 %v600, 0.70710677
        %v675 = vmul.f32 %v605, 0.70710677
        %v676 = vmul.f32 %v610, 0.70710677
        %v677 = verf.f32.pop %v645
        %v678 = verf.f32.pop %v646
        %v679 = verf.f32.pop %v647
        %v680 = verf.f32.pop %v648
        %v681 = verf.f32.pop %v649
        %v682 = verf.f32.pop %v650
        %v683 = verf.f32.pop %v651
        %v684 = verf.f32.pop %v652
        %v685 = verf.f32.pop %v653
        %v686 = verf.f32.pop %v654
        %v687 = verf.f32.pop %v655
        %v688 = verf.f32.pop %v656
        %v689 = verf.f32.pop %v657
        %v690 = verf.f32.pop %v658
        %v691 = verf.f32.pop %v659
        %v692 = verf.f32.pop %v660
        %v693 = verf.f32.pop %v661
        %v694 = verf.f32.pop %v662
        %v695 = verf.f32.pop %v663
        %v696 = verf.f32.pop %v664
        %v697 = verf.f32.pop %v665
        %v698 = verf.f32.pop %v666
        %v699 = verf.f32.pop %v667
        %v700 = verf.f32.pop %v668
        %v701 = verf.f32.pop %v669
        %v702 = verf.f32.pop %v670
        %v703 = verf.f32.pop %v671
        %v704 = verf.f32.pop %v672
        %v705 = verf.f32.pop %v673
        %v706 = verf.f32.pop %v674
        %v707 = verf.f32.pop %v675
        %v708 = verf.f32.pop %v676
        %v709 = vadd.f32 %v677, 1.0
        %v710 = vadd.f32 %v678, 1.0
        %v711 = vadd.f32 %v679, 1.0
        %v712 = vadd.f32 %v680, 1.0
        %v713 = vadd.f32 %v681, 1.0
        %v714 = vadd.f32 %v682, 1.0
        %v715 = vadd.f32 %v683, 1.0
        %v716 = vadd.f32 %v684, 1.0
        %v717 = vadd.f32 %v685, 1.0
        %v718 = vadd.f32 %v686, 1.0
        %v719 = vadd.f32 %v687, 1.0
        %v720 = vadd.f32 %v688, 1.0
        %v721 = vadd.f32 %v689, 1.0
        %v722 = vadd.f32 %v690, 1.0
        %v723 = vadd.f32 %v691, 1.0
        %v724 = vadd.f32 %v692, 1.0
        %v725 = vadd.f32 %v693, 1.0
        %v726 = vadd.f32 %v694, 1.0
        %v727 = vadd.f32 %v695, 1.0
        %v728 = vadd.f32 %v696, 1.0
        %v729 = vadd.f32 %v697, 1.0
        %v730 = vadd.f32 %v698, 1.0
        %v731 = vadd.f32 %v699, 1.0
        %v732 = vadd.f32 %v700, 1.0
        %v733 = vadd.f32 %v701, 1.0
        %v734 = vadd.f32 %v702, 1.0
        %v735 = vadd.f32 %v703, 1.0
        %v736 = vadd.f32 %v704, 1.0
        %v737 = vadd.f32 %v705, 1.0
        %v738 = vadd.f32 %v706, 1.0
        %v739 = vadd.f32 %v707, 1.0
        %v740 = vadd.f32 %v708, 1.0
        %v741 = vmul.f32 %v613, %v709
        %v742 = vmul.f32 %v614, %v710
        %v743 = vmul.f32 %v615, %v711
        %v744 = vmul.f32 %v616, %v712
        %v745 = vmul.f32 %v617, %v713
        %v746 = vmul.f32 %v618, %v714
        %v747 = vmul.f32 %v619, %v715
        %v748 = vmul.f32 %v620, %v716
        %v749 = vmul.f32 %v621, %v717
        %v750 = vmul.f32 %v622, %v718
        %v751 = vmul.f32 %v623, %v719
        %v752 = vmul.f32 %v624, %v720
        %v753 = vmul.f32 %v625, %v721
        %v754 = vmul.f32 %v626, %v722
        %v755 = vmul.f32 %v627, %v723
        %v756 = vmul.f32 %v628, %v724
        %v757 = vmul.f32 %v629, %v725
        %v758 = vmul.f32 %v630, %v726
        %v759 = vmul.f32 %v631, %v727
        %v760 = vmul.f32 %v632, %v728
        %v761 = vmul.f32 %v633, %v729
        %v762 = vmul.f32 %v634, %v730
        %v763 = vmul.f32 %v635, %v731
        %v764 = vmul.f32 %v636, %v732
        %v765 = vmul.f32 %v637, %v733
        %v766 = vmul.f32 %v638, %v734
        %v767 = vmul.f32 %v639, %v735
        %v768 = vmul.f32 %v640, %v736
        %v769 = vmul.f32 %v641, %v737
        %v770 = vmul.f32 %v642, %v738
        %v771 = vmul.f32 %v643, %v739
        %v772 = vmul.f32 %v644, %v740
        %773 = vadd.xlane.f32.xlu0 %v741
        %v774 = vpop.xlane.xlu0 %773
        %775 = vadd.xlane.f32.xlu0 %v742
        %v776 = vpop.xlane.xlu0 %775
        %777 = vadd.xlane.f32.xlu0 %v743
        %v778 = vpop.xlane.xlu0 %777
        %779 = vadd.xlane.f32.xlu0 %v744
        %v780 = vpop.xlane.xlu0 %779
        %781 = vadd.xlane.f32.xlu0 %v745
        %v782 = vpop.xlane.xlu0 %781
        %783 = vadd.xlane.f32.xlu0 %v746
        %v784 = vpop.xlane.xlu0 %783
        %785 = vadd.xlane.f32.xlu0 %v747
        %v786 = vpop.xlane.xlu0 %785
        %787 = vadd.xlane.f32.xlu0 %v748
        %v788 = vpop.xlane.xlu0 %787
        %789 = vadd.xlane.f32.xlu0 %v749
        %v790 = vpop.xlane.xlu0 %789
        %791 = vadd.xlane.f32.xlu0 %v750
        %v792 = vpop.xlane.xlu0 %791
        %793 = vadd.xlane.f32.xlu0 %v751
        %v794 = vpop.xlane.xlu0 %793
        %795 = vadd.xlane.f32.xlu0 %v752
        %v796 = vpop.xlane.xlu0 %795
        %797 = vadd.xlane.f32.xlu0 %v753
        %v798 = vpop.xlane.xlu0 %797
        %799 = vadd.xlane.f32.xlu0 %v754
        %v800 = vpop.xlane.xlu0 %799
        %801 = vadd.xlane.f32.xlu0 %v755
        %v802 = vpop.xlane.xlu0 %801
        %803 = vadd.xlane.f32.xlu0 %v756
        %v804 = vpop.xlane.xlu0 %803
        %805 = vadd.xlane.f32.xlu0 %v757
        %v806 = vpop.xlane.xlu0 %805
        %807 = vadd.xlane.f32.xlu0 %v758
        %v808 = vpop.xlane.xlu0 %807
        %809 = vadd.xlane.f32.xlu0 %v759
        %v810 = vpop.xlane.xlu0 %809
        %811 = vadd.xlane.f32.xlu0 %v760
        %v812 = vpop.xlane.xlu0 %811
        %813 = vadd.xlane.f32.xlu0 %v761
        %v814 = vpop.xlane.xlu0 %813
        %815 = vadd.xlane.f32.xlu0 %v762
        %v816 = vpop.xlane.xlu0 %815
        %817 = vadd.xlane.f32.xlu0 %v763
        %v818 = vpop.xlane.xlu0 %817
        %819 = vadd.xlane.f32.xlu0 %v764
        %v820 = vpop.xlane.xlu0 %819
        %821 = vadd.xlane.f32.xlu0 %v765
        %v822 = vpop.xlane.xlu0 %821
        %823 = vadd.xlane.f32.xlu0 %v766
        %v824 = vpop.xlane.xlu0 %823
        %825 = vadd.xlane.f32.xlu0 %v767
        %v826 = vpop.xlane.xlu0 %825
        %827 = vadd.xlane.f32.xlu0 %v768
        %v828 = vpop.xlane.xlu0 %827
        %829 = vadd.xlane.f32.xlu0 %v769
        %v830 = vpop.xlane.xlu0 %829
        %831 = vadd.xlane.f32.xlu0 %v770
        %v832 = vpop.xlane.xlu0 %831
        %833 = vadd.xlane.f32.xlu0 %v771
        %v834 = vpop.xlane.xlu0 %833
        %835 = vadd.xlane.f32.xlu0 %v772
        %v836 = vpop.xlane.xlu0 %835
        %v837 = vmul.f32 %v741, %v741
        %v838 = vmul.f32 %v742, %v742
        %v839 = vmul.f32 %v743, %v743
        %v840 = vmul.f32 %v744, %v744
        %v841 = vmul.f32 %v745, %v745
        %v842 = vmul.f32 %v746, %v746
        %v843 = vmul.f32 %v747, %v747
        %v844 = vmul.f32 %v748, %v748
        %v845 = vmul.f32 %v749, %v749
        %v846 = vmul.f32 %v750, %v750
        %v847 = vmul.f32 %v751, %v751
        %v848 = vmul.f32 %v752, %v752
        %v849 = vmul.f32 %v753, %v753
        %v850 = vmul.f32 %v754, %v754
        %v851 = vmul.f32 %v755, %v755
        %v852 = vmul.f32 %v756, %v756
        %v853 = vmul.f32 %v757, %v757
        %v854 = vmul.f32 %v758, %v758
        %v855 = vmul.f32 %v759, %v759
        %v856 = vmul.f32 %v760, %v760
        %v857 = vmul.f32 %v761, %v761
        %v858 = vmul.f32 %v762, %v762
        %v859 = vmul.f32 %v763, %v763
        %v860 = vmul.f32 %v764, %v764
        %v861 = vmul.f32 %v765, %v765
        %v862 = vmul.f32 %v766, %v766
        %v863 = vmul.f32 %v767, %v767
        %v864 = vmul.f32 %v768, %v768
        %v865 = vmul.f32 %v769, %v769
        %v866 = vmul.f32 %v770, %v770
        %v867 = vmul.f32 %v771, %v771
        %v868 = vmul.f32 %v772, %v772
        %869 = vadd.xlane.f32.xlu0 %v837
        %v870 = vpop.xlane.xlu0 %869
        %871 = vadd.xlane.f32.xlu0 %v838
        %v872 = vpop.xlane.xlu0 %871
        %873 = vadd.xlane.f32.xlu0 %v839
        %v874 = vpop.xlane.xlu0 %873
        %875 = vadd.xlane.f32.xlu0 %v840
        %v876 = vpop.xlane.xlu0 %875
        %877 = vadd.xlane.f32.xlu0 %v841
        %v878 = vpop.xlane.xlu0 %877
        %879 = vadd.xlane.f32.xlu0 %v842
        %v880 = vpop.xlane.xlu0 %879
        %881 = vadd.xlane.f32.xlu0 %v843
        %v882 = vpop.xlane.xlu0 %881
        %883 = vadd.xlane.f32.xlu0 %v844
        %v884 = vpop.xlane.xlu0 %883
        %885 = vadd.xlane.f32.xlu0 %v845
        %v886 = vpop.xlane.xlu0 %885
        %887 = vadd.xlane.f32.xlu0 %v846
        %v888 = vpop.xlane.xlu0 %887
        %889 = vadd.xlane.f32.xlu0 %v847
        %v890 = vpop.xlane.xlu0 %889
        %891 = vadd.xlane.f32.xlu0 %v848
        %v892 = vpop.xlane.xlu0 %891
        %893 = vadd.xlane.f32.xlu0 %v849
        %v894 = vpop.xlane.xlu0 %893
        %895 = vadd.xlane.f32.xlu0 %v850
        %v896 = vpop.xlane.xlu0 %895
        %897 = vadd.xlane.f32.xlu0 %v851
        %v898 = vpop.xlane.xlu0 %897
        %899 = vadd.xlane.f32.xlu0 %v852
        %v900 = vpop.xlane.xlu0 %899
        %901 = vadd.xlane.f32.xlu0 %v853
        %v902 = vpop.xlane.xlu0 %901
        %903 = vadd.xlane.f32.xlu0 %v854
        %v904 = vpop.xlane.xlu0 %903
        %905 = vadd.xlane.f32.xlu0 %v855
        %v906 = vpop.xlane.xlu0 %905
        %907 = vadd.xlane.f32.xlu0 %v856
        %v908 = vpop.xlane.xlu0 %907
        %909 = vadd.xlane.f32.xlu0 %v857
        %v910 = vpop.xlane.xlu0 %909
        %911 = vadd.xlane.f32.xlu0 %v858
        %v912 = vpop.xlane.xlu0 %911
        %913 = vadd.xlane.f32.xlu0 %v859
        %v914 = vpop.xlane.xlu0 %913
        %915 = vadd.xlane.f32.xlu0 %v860
        %v916 = vpop.xlane.xlu0 %915
        %917 = vadd.xlane.f32.xlu0 %v861
        %v918 = vpop.xlane.xlu0 %917
        %919 = vadd.xlane.f32.xlu0 %v862
        %v920 = vpop.xlane.xlu0 %919
        %921 = vadd.xlane.f32.xlu0 %v863
        %v922 = vpop.xlane.xlu0 %921
        %923 = vadd.xlane.f32.xlu0 %v864
        %v924 = vpop.xlane.xlu0 %923
        %925 = vadd.xlane.f32.xlu0 %v865
        %v926 = vpop.xlane.xlu0 %925
        %927 = vadd.xlane.f32.xlu0 %v866
        %v928 = vpop.xlane.xlu0 %927
        %929 = vadd.xlane.f32.xlu0 %v867
        %v930 = vpop.xlane.xlu0 %929
        %931 = vadd.xlane.f32.xlu0 %v868
        %v932 = vpop.xlane.xlu0 %931
        %v933 = vmul.f32 %v774, 0.0078125
        %v934 = vmul.f32 %v776, 0.0078125
        %v935 = vmul.f32 %v778, 0.0078125
        %v936 = vmul.f32 %v780, 0.0078125
        %v937 = vmul.f32 %v782, 0.0078125
        %v938 = vmul.f32 %v784, 0.0078125
        %v939 = vmul.f32 %v786, 0.0078125
        %v940 = vmul.f32 %v788, 0.0078125
        %v941 = vmul.f32 %v790, 0.0078125
        %v942 = vmul.f32 %v792, 0.0078125
        %v943 = vmul.f32 %v794, 0.0078125
        %v944 = vmul.f32 %v796, 0.0078125
        %v945 = vmul.f32 %v798, 0.0078125
        %v946 = vmul.f32 %v800, 0.0078125
        %v947 = vmul.f32 %v802, 0.0078125
        %v948 = vmul.f32 %v804, 0.0078125
        %v949 = vmul.f32 %v806, 0.0078125
        %v950 = vmul.f32 %v808, 0.0078125
        %v951 = vmul.f32 %v810, 0.0078125
        %v952 = vmul.f32 %v812, 0.0078125
        %v953 = vmul.f32 %v814, 0.0078125
        %v954 = vmul.f32 %v816, 0.0078125
        %v955 = vmul.f32 %v818, 0.0078125
        %v956 = vmul.f32 %v820, 0.0078125
        %v957 = vmul.f32 %v822, 0.0078125
        %v958 = vmul.f32 %v824, 0.0078125
        %v959 = vmul.f32 %v826, 0.0078125
        %v960 = vmul.f32 %v828, 0.0078125
        %v961 = vmul.f32 %v830, 0.0078125
        %v962 = vmul.f32 %v832, 0.0078125
        %v963 = vmul.f32 %v834, 0.0078125
        %v964 = vmul.f32 %v836, 0.0078125
        %v965 = vmul.f32 %v870, 0.0078125
        %v966 = vmul.f32 %v872, 0.0078125
        %v967 = vmul.f32 %v874, 0.0078125
        %v968 = vmul.f32 %v876, 0.0078125
        %v969 = vmul.f32 %v878, 0.0078125
        %v970 = vmul.f32 %v880, 0.0078125
        %v971 = vmul.f32 %v882, 0.0078125
        %v972 = vmul.f32 %v884, 0.0078125
        %v973 = vmul.f32 %v886, 0.0078125
        %v974 = vmul.f32 %v888, 0.0078125
        %v975 = vmul.f32 %v890, 0.0078125
        %v976 = vmul.f32 %v892, 0.0078125
        %v977 = vmul.f32 %v894, 0.0078125
        %v978 = vmul.f32 %v896, 0.0078125
        %v979 = vmul.f32 %v898, 0.0078125
        %v980 = vmul.f32 %v900, 0.0078125
        %v981 = vmul.f32 %v902, 0.0078125
        %v982 = vmul.f32 %v904, 0.0078125
        %v983 = vmul.f32 %v906, 0.0078125
        %v984 = vmul.f32 %v908, 0.0078125
        %v985 = vmul.f32 %v910, 0.0078125
        %v986 = vmul.f32 %v912, 0.0078125
        %v987 = vmul.f32 %v914, 0.0078125
        %v988 = vmul.f32 %v916, 0.0078125
        %v989 = vmul.f32 %v918, 0.0078125
        %v990 = vmul.f32 %v920, 0.0078125
        %v991 = vmul.f32 %v922, 0.0078125
        %v992 = vmul.f32 %v924, 0.0078125
        %v993 = vmul.f32 %v926, 0.0078125
        %v994 = vmul.f32 %v928, 0.0078125
        %v995 = vmul.f32 %v930, 0.0078125
        %v996 = vmul.f32 %v932, 0.0078125
        %v997 = vmul.f32 %v933, %v933
        %v998 = vmul.f32 %v934, %v934
        %v999 = vmul.f32 %v935, %v935
        %v1000 = vmul.f32 %v936, %v936
        %v1001 = vmul.f32 %v937, %v937
        %v1002 = vmul.f32 %v938, %v938
        %v1003 = vmul.f32 %v939, %v939
        %v1004 = vmul.f32 %v940, %v940
        %v1005 = vmul.f32 %v941, %v941
        %v1006 = vmul.f32 %v942, %v942
        %v1007 = vmul.f32 %v943, %v943
        %v1008 = vmul.f32 %v944, %v944
        %v1009 = vmul.f32 %v945, %v945
        %v1010 = vmul.f32 %v946, %v946
        %v1011 = vmul.f32 %v947, %v947
        %v1012 = vmul.f32 %v948, %v948
        %v1013 = vmul.f32 %v949, %v949
        %v1014 = vmul.f32 %v950, %v950
        %v1015 = vmul.f32 %v951, %v951
        %v1016 = vmul.f32 %v952, %v952
        %v1017 = vmul.f32 %v953, %v953
        %v1018 = vmul.f32 %v954, %v954
        %v1019 = vmul.f32 %v955, %v955
        %v1020 = vmul.f32 %v956, %v956
        %v1021 = vmul.f32 %v957, %v957
        %v1022 = vmul.f32 %v958, %v958
        %v1023 = vmul.f32 %v959, %v959
        %v1024 = vmul.f32 %v960, %v960
        %v1025 = vmul.f32 %v961, %v961
        %v1026 = vmul.f32 %v962, %v962
        %v1027 = vmul.f32 %v963, %v963
        %v1028 = vmul.f32 %v964, %v964
        %v1029 = vsub.f32 %v965, %v997
        %v1030 = vsub.f32 %v966, %v998
        %v1031 = vsub.f32 %v967, %v999
        %v1032 = vsub.f32 %v968, %v1000
        %v1033 = vsub.f32 %v969, %v1001
        %v1034 = vsub.f32 %v970, %v1002
        %v1035 = vsub.f32 %v971, %v1003
        %v1036 = vsub.f32 %v972, %v1004
        %v1037 = vsub.f32 %v973, %v1005
        %v1038 = vsub.f32 %v974, %v1006
        %v1039 = vsub.f32 %v975, %v1007
        %v1040 = vsub.f32 %v976, %v1008
        %v1041 = vsub.f32 %v977, %v1009
        %v1042 = vsub.f32 %v978, %v1010
        %v1043 = vsub.f32 %v979, %v1011
        %v1044 = vsub.f32 %v980, %v1012
        %v1045 = vsub.f32 %v981, %v1013
        %v1046 = vsub.f32 %v982, %v1014
        %v1047 = vsub.f32 %v983, %v1015
        %v1048 = vsub.f32 %v984, %v1016
        %v1049 = vsub.f32 %v985, %v1017
        %v1050 = vsub.f32 %v986, %v1018
        %v1051 = vsub.f32 %v987, %v1019
        %v1052 = vsub.f32 %v988, %v1020
        %v1053 = vsub.f32 %v989, %v1021
        %v1054 = vsub.f32 %v990, %v1022
        %v1055 = vsub.f32 %v991, %v1023
        %v1056 = vsub.f32 %v992, %v1024
        %v1057 = vsub.f32 %v993, %v1025
        %v1058 = vsub.f32 %v994, %v1026
        %v1059 = vsub.f32 %v995, %v1027
        %v1060 = vsub.f32 %v996, %v1028
        %v1061 = vsub.f32 %v741, %v933
        %v1062 = vsub.f32 %v742, %v934
        %v1063 = vsub.f32 %v743, %v935
        %v1064 = vsub.f32 %v744, %v936
        %v1065 = vsub.f32 %v745, %v937
        %v1066 = vsub.f32 %v746, %v938
        %v1067 = vsub.f32 %v747, %v939
        %v1068 = vsub.f32 %v748, %v940
        %v1069 = vsub.f32 %v749, %v941
        %v1070 = vsub.f32 %v750, %v942
        %v1071 = vsub.f32 %v751, %v943
        %v1072 = vsub.f32 %v752, %v944
        %v1073 = vsub.f32 %v753, %v945
        %v1074 = vsub.f32 %v754, %v946
        %v1075 = vsub.f32 %v755, %v947
        %v1076 = vsub.f32 %v756, %v948
        %v1077 = vsub.f32 %v757, %v949
        %v1078 = vsub.f32 %v758, %v950
        %v1079 = vsub.f32 %v759, %v951
        %v1080 = vsub.f32 %v760, %v952
        %v1081 = vsub.f32 %v761, %v953
        %v1082 = vsub.f32 %v762, %v954
        %v1083 = vsub.f32 %v763, %v955
        %v1084 = vsub.f32 %v764, %v956
        %v1085 = vsub.f32 %v765, %v957
        %v1086 = vsub.f32 %v766, %v958
        %v1087 = vsub.f32 %v767, %v959
        %v1088 = vsub.f32 %v768, %v960
        %v1089 = vsub.f32 %v769, %v961
        %v1090 = vsub.f32 %v770, %v962
        %v1091 = vsub.f32 %v771, %v963
        %v1092 = vsub.f32 %v772, %v964
        %v1093 = vadd.f32 %v1029, 1e-05
        %v1094 = vadd.f32 %v1030, 1e-05
        %v1095 = vadd.f32 %v1031, 1e-05
        %v1096 = vadd.f32 %v1032, 1e-05
        %v1097 = vadd.f32 %v1033, 1e-05
        %v1098 = vadd.f32 %v1034, 1e-05
        %v1099 = vadd.f32 %v1035, 1e-05
        %v1100 = vadd.f32 %v1036, 1e-05
        %v1101 = vadd.f32 %v1037, 1e-05
        %v1102 = vadd.f32 %v1038, 1e-05
        %v1103 = vadd.f32 %v1039, 1e-05
        %v1104 = vadd.f32 %v1040, 1e-05
        %v1105 = vadd.f32 %v1041, 1e-05
        %v1106 = vadd.f32 %v1042, 1e-05
        %v1107 = vadd.f32 %v1043, 1e-05
        %v1108 = vadd.f32 %v1044, 1e-05
        %v1109 = vadd.f32 %v1045, 1e-05
        %v1110 = vadd.f32 %v1046, 1e-05
        %v1111 = vadd.f32 %v1047, 1e-05
        %v1112 = vadd.f32 %v1048, 1e-05
        %v1113 = vadd.f32 %v1049, 1e-05
        %v1114 = vadd.f32 %v1050, 1e-05
        %v1115 = vadd.f32 %v1051, 1e-05
        %v1116 = vadd.f32 %v1052, 1e-05
        %v1117 = vadd.f32 %v1053, 1e-05
        %v1118 = vadd.f32 %v1054, 1e-05
        %v1119 = vadd.f32 %v1055, 1e-05
        %v1120 = vadd.f32 %v1056, 1e-05
        %v1121 = vadd.f32 %v1057, 1e-05
        %v1122 = vadd.f32 %v1058, 1e-05
        %v1123 = vadd.f32 %v1059, 1e-05
        %v1124 = vadd.f32 %v1060, 1e-05
        %v1125 = vrsqrt.pop %v1093
        %v1126 = vrsqrt.pop %v1094
        %v1127 = vrsqrt.pop %v1095
        %v1128 = vrsqrt.pop %v1096
        %v1129 = vrsqrt.pop %v1097
        %v1130 = vrsqrt.pop %v1098
        %v1131 = vrsqrt.pop %v1099
        %v1132 = vrsqrt.pop %v1100
        %v1133 = vrsqrt.pop %v1101
        %v1134 = vrsqrt.pop %v1102
        %v1135 = vrsqrt.pop %v1103
        %v1136 = vrsqrt.pop %v1104
        %v1137 = vrsqrt.pop %v1105
        %v1138 = vrsqrt.pop %v1106
        %v1139 = vrsqrt.pop %v1107
        %v1140 = vrsqrt.pop %v1108
        %v1141 = vrsqrt.pop %v1109
        %v1142 = vrsqrt.pop %v1110
        %v1143 = vrsqrt.pop %v1111
        %v1144 = vrsqrt.pop %v1112
        %v1145 = vrsqrt.pop %v1113
        %v1146 = vrsqrt.pop %v1114
        %v1147 = vrsqrt.pop %v1115
        %v1148 = vrsqrt.pop %v1116
        %v1149 = vrsqrt.pop %v1117
        %v1150 = vrsqrt.pop %v1118
        %v1151 = vrsqrt.pop %v1119
        %v1152 = vrsqrt.pop %v1120
        %v1153 = vrsqrt.pop %v1121
        %v1154 = vrsqrt.pop %v1122
        %v1155 = vrsqrt.pop %v1123
        %v1156 = vrsqrt.pop %v1124
        %v1157 = vmul.f32 %v1061, %v1125
        %v1158 = vmul.f32 %v1062, %v1126
        %v1159 = vmul.f32 %v1063, %v1127
        %v1160 = vmul.f32 %v1064, %v1128
        %v1161 = vmul.f32 %v1065, %v1129
        %v1162 = vmul.f32 %v1066, %v1130
        %v1163 = vmul.f32 %v1067, %v1131
        %v1164 = vmul.f32 %v1068, %v1132
        %v1165 = vmul.f32 %v1069, %v1133
        %v1166 = vmul.f32 %v1070, %v1134
        %v1167 = vmul.f32 %v1071, %v1135
        %v1168 = vmul.f32 %v1072, %v1136
        %v1169 = vmul.f32 %v1073, %v1137
        %v1170 = vmul.f32 %v1074, %v1138
        %v1171 = vmul.f32 %v1075, %v1139
        %v1172 = vmul.f32 %v1076, %v1140
        %v1173 = vmul.f32 %v1077, %v1141
        %v1174 = vmul.f32 %v1078, %v1142
        %v1175 = vmul.f32 %v1079, %v1143
        %v1176 = vmul.f32 %v1080, %v1144
        %v1177 = vmul.f32 %v1081, %v1145
        %v1178 = vmul.f32 %v1082, %v1146
        %v1179 = vmul.f32 %v1083, %v1147
        %v1180 = vmul.f32 %v1084, %v1148
        %v1181 = vmul.f32 %v1085, %v1149
        %v1182 = vmul.f32 %v1086, %v1150
        %v1183 = vmul.f32 %v1087, %v1151
        %v1184 = vmul.f32 %v1088, %v1152
        %v1185 = vmul.f32 %v1089, %v1153
        %v1186 = vmul.f32 %v1090, %v1154
        %v1187 = vmul.f32 %v1091, %v1155
        %v1188 = vmul.f32 %v1092, %v1156
        %v1189 = vlaneseq
        %v1190 = vshrl.u32 %v1189, 7
        %v1191 = vsub.s32 0, %v1190
        %v1192 = vrot.slane %v331, %v1191
        %v1193 = vmul.f32 %v1157, %v1192
        %v1194 = vmul.f32 %v1158, %v1192
        %v1195 = vmul.f32 %v1159, %v1192
        %v1196 = vmul.f32 %v1160, %v1192
        %v1197 = vmul.f32 %v1161, %v1192
        %v1198 = vmul.f32 %v1162, %v1192
        %v1199 = vmul.f32 %v1163, %v1192
        %v1200 = vmul.f32 %v1164, %v1192
        %v1201 = vmul.f32 %v1165, %v1192
        %v1202 = vmul.f32 %v1166, %v1192
        %v1203 = vmul.f32 %v1167, %v1192
        %v1204 = vmul.f32 %v1168, %v1192
        %v1205 = vmul.f32 %v1169, %v1192
        %v1206 = vmul.f32 %v1170, %v1192
        %v1207 = vmul.f32 %v1171, %v1192
        %v1208 = vmul.f32 %v1172, %v1192
        %v1209 = vmul.f32 %v1173, %v1192
        %v1210 = vmul.f32 %v1174, %v1192
        %v1211 = vmul.f32 %v1175, %v1192
        %v1212 = vmul.f32 %v1176, %v1192
        %v1213 = vmul.f32 %v1177, %v1192
        %v1214 = vmul.f32 %v1178, %v1192
        %v1215 = vmul.f32 %v1179, %v1192
        %v1216 = vmul.f32 %v1180, %v1192
        %v1217 = vmul.f32 %v1181, %v1192
        %v1218 = vmul.f32 %v1182, %v1192
        %v1219 = vmul.f32 %v1183, %v1192
        %v1220 = vmul.f32 %v1184, %v1192
        %v1221 = vmul.f32 %v1185, %v1192
        %v1222 = vmul.f32 %v1186, %v1192
        %v1223 = vmul.f32 %v1187, %v1192
        %v1224 = vmul.f32 %v1188, %v1192
        %v1225 = vlaneseq
        %v1226 = vshrl.u32 %v1225, 7
        %v1227 = vsub.s32 0, %v1226
        %v1228 = vrot.slane %v332, %v1227
        %v1229 = vadd.f32 %v1193, %v1228
        %v1230 = vadd.f32 %v1194, %v1228
        %v1231 = vadd.f32 %v1195, %v1228
        %v1232 = vadd.f32 %v1196, %v1228
        %v1233 = vadd.f32 %v1197, %v1228
        %v1234 = vadd.f32 %v1198, %v1228
        %v1235 = vadd.f32 %v1199, %v1228
        %v1236 = vadd.f32 %v1200, %v1228
        %v1237 = vadd.f32 %v1201, %v1228
        %v1238 = vadd.f32 %v1202, %v1228
        %v1239 = vadd.f32 %v1203, %v1228
        %v1240 = vadd.f32 %v1204, %v1228
        %v1241 = vadd.f32 %v1205, %v1228
        %v1242 = vadd.f32 %v1206, %v1228
        %v1243 = vadd.f32 %v1207, %v1228
        %v1244 = vadd.f32 %v1208, %v1228
        %v1245 = vadd.f32 %v1209, %v1228
        %v1246 = vadd.f32 %v1210, %v1228
        %v1247 = vadd.f32 %v1211, %v1228
        %v1248 = vadd.f32 %v1212, %v1228
        %v1249 = vadd.f32 %v1213, %v1228
        %v1250 = vadd.f32 %v1214, %v1228
        %v1251 = vadd.f32 %v1215, %v1228
        %v1252 = vadd.f32 %v1216, %v1228
        %v1253 = vadd.f32 %v1217, %v1228
        %v1254 = vadd.f32 %v1218, %v1228
        %v1255 = vadd.f32 %v1219, %v1228
        %v1256 = vadd.f32 %v1220, %v1228
        %v1257 = vadd.f32 %v1221, %v1228
        %v1258 = vadd.f32 %v1222, %v1228
        %v1259 = vadd.f32 %v1223, %v1228
        %v1260 = vadd.f32 %v1224, %v1228
        %v1261 = vld [vmem:[#allocation7] sm:$0xff]
        %v1262 = vld [vmem:[#allocation7 + $0x8] sm:$0xff]
        %v1263 = vld [vmem:[#allocation7 + $0x10] sm:$0xff]
        %v1264 = vld [vmem:[#allocation7 + $0x18] sm:$0xff]
        %v1265 = vld [vmem:[#allocation7 + $0x20] sm:$0xff]
        %v1266 = vld [vmem:[#allocation7 + $0x28] sm:$0xff]
        %v1267 = vld [vmem:[#allocation7 + $0x30] sm:$0xff]
        %v1268 = vld [vmem:[#allocation7 + $0x38] sm:$0xff]
        %v1269 = vld [vmem:[#allocation7 + $0x40] sm:$0xff]
        %v1270 = vld [vmem:[#allocation7 + $0x48] sm:$0xff]
        %v1271 = vld [vmem:[#allocation7 + $0x50] sm:$0xff]
        %v1272 = vld [vmem:[#allocation7 + $0x58] sm:$0xff]
        %v1273 = vld [vmem:[#allocation7 + $0x60] sm:$0xff]
        %v1274 = vld [vmem:[#allocation7 + $0x68] sm:$0xff]
        %v1275 = vld [vmem:[#allocation7 + $0x70] sm:$0xff]
        %v1276 = vld [vmem:[#allocation7 + $0x78] sm:$0xff]
        %v1277 = vlaneseq
        %v1278 = vshrl.u32 %v1277, 7
        %v1279 = vsub.s32 0, %v1278
        %v1280 = vrot.slane %v333, %v1279
        %1281 = vmatprep.subr.mxu0 0.0
        %1282 = vmatpush1.msra.mxu0 %v1261
        %1283 = vmatprep.subr.mxu0 0.0
        %1284 = vmatpush1.msra.mxu0 %v1262
        %1285 = vmatprep.subr.mxu0 0.0
        %1286 = vmatpush1.msra.mxu0 %v1263
        %1287 = vmatprep.subr.mxu0 0.0
        %1288 = vmatpush1.msra.mxu0 %v1264
        %1289 = vmatprep.subr.mxu0 0.0
        %1290 = vmatpush1.msra.mxu0 %v1265
        %1291 = vmatprep.subr.mxu0 0.0
        %1292 = vmatpush1.msra.mxu0 %v1266
        %1293 = vmatprep.subr.mxu0 0.0
        %1294 = vmatpush1.msra.mxu0 %v1267
        %1295 = vmatprep.subr.mxu0 0.0
        %1296 = vmatpush1.msra.mxu0 %v1268
        %1297 = vmatprep.subr.mxu0 0.0
        %1298 = vmatpush1.msra.mxu0 %v1269
        %1299 = vmatprep.subr.mxu0 0.0
        %1300 = vmatpush1.msra.mxu0 %v1270
        %1301 = vmatprep.subr.mxu0 0.0
        %1302 = vmatpush1.msra.mxu0 %v1271
        %1303 = vmatprep.subr.mxu0 0.0
        %1304 = vmatpush1.msra.mxu0 %v1272
        %1305 = vmatprep.subr.mxu0 0.0
        %1306 = vmatpush1.msra.mxu0 %v1273
        %1307 = vmatprep.subr.mxu0 0.0
        %1308 = vmatpush1.msra.mxu0 %v1274
        %1309 = vmatprep.subr.mxu0 0.0
        %1310 = vmatpush1.msra.mxu0 %v1275
        %1311 = vmatprep.subr.mxu0 0.0
        %1312 = vmatpush1.msra.mxu0 %v1276
        %1313 = vmatprep.subr.mxu0 0.0
        %1314 = vmatpush1.msra.mxu0 0.0
        %1315 = vmatprep.subr.mxu0 0.0
        %1316 = vmatpush1.msra.mxu0 0.0
        %1317 = vmatprep.subr.mxu0 0.0
        %1318 = vmatpush1.msra.mxu0 0.0
        %1319 = vmatprep.subr.mxu0 0.0
        %1320 = vmatpush1.msra.mxu0 0.0
        %1321 = vmatprep.subr.mxu0 0.0
        %1322 = vmatpush1.msra.mxu0 0.0
        %1323 = vmatprep.subr.mxu0 0.0
        %1324 = vmatpush1.msra.mxu0 0.0
        %1325 = vmatprep.subr.mxu0 0.0
        %1326 = vmatpush1.msra.mxu0 0.0
        %1327 = vmatprep.subr.mxu0 0.0
        %1328 = vmatpush1.msra.mxu0 0.0
        %1329 = vmatprep.subr.mxu0 0.0
        %1330 = vmatpush1.msra.mxu0 0.0
        %1331 = vmatprep.subr.mxu0 0.0
        %1332 = vmatpush1.msra.mxu0 0.0
        %1333 = vmatprep.subr.mxu0 0.0
        %1334 = vmatpush1.msra.mxu0 0.0
        %1335 = vmatprep.subr.mxu0 0.0
        %1336 = vmatpush1.msra.mxu0 0.0
        %1337 = vmatprep.subr.mxu0 0.0
        %1338 = vmatpush1.msra.mxu0 0.0
        %1339 = vmatprep.subr.mxu0 0.0
        %1340 = vmatpush1.msra.mxu0 0.0
        %1341 = vmatprep.subr.mxu0 0.0
        %1342 = vmatpush1.msra.mxu0 0.0
        %1343 = vmatprep.subr.mxu0 0.0
        %1344 = vmatpush1.msra.mxu0 0.0
        %1345 = vmatprep.mubr.f32.mxu0 0.0
        %1346 = vmatmul.mubr.f32.gmra.mrb[0].mxu0 %v1229
        %v1347 = vpop.f32.mrb[0].mxu0
        %v1348 = vadd.f32 %v1280, %v1347
        %v1349 = vpop.f32.mrb[0].mxu0
        %1350 = vmatprep.mubr.f32.mxu0 0.0
        %1351 = vmatmul.mubr.f32.gmra.mrb[0].mxu0 %v1230
        %v1352 = vpop.f32.mrb[0].mxu0
        %v1353 = vadd.f32 %v1280, %v1352
        %v1354 = vpop.f32.mrb[0].mxu0
        %1355 = vmatprep.mubr.f32.mxu0 0.0
        %1356 = vmatmul.mubr.f32.gmra.mrb[0].mxu0 %v1231
        %v1357 = vpop.f32.mrb[0].mxu0
        %v1358 = vadd.f32 %v1280, %v1357
        %v1359 = vpop.f32.mrb[0].mxu0
        %1360 = vmatprep.mubr.f32.mxu0 0.0
        %1361 = vmatmul.mubr.f32.gmra.mrb[0].mxu0 %v1232
        %v1362 = vpop.f32.mrb[0].mxu0
        %v1363 = vadd.f32 %v1280, %v1362
        %v1364 = vpop.f32.mrb[0].mxu0
        %1365 = vmatprep.mubr.f32.mxu0 0.0
        %1366 = vmatmul.mubr.f32.gmra.mrb[0].mxu0 %v1233
        %v1367 = vpop.f32.mrb[0].mxu0
        %v1368 = vadd.f32 %v1280, %v1367
        %v1369 = vpop.f32.mrb[0].mxu0
        %1370 = vmatprep.mubr.f32.mxu0 0.0
        %1371 = vmatmul.mubr.f32.gmra.mrb[0].mxu0 %v1234
        %v1372 = vpop.f32.mrb[0].mxu0
        %v1373 = vadd.f32 %v1280, %v1372
        %v1374 = vpop.f32.mrb[0].mxu0
        %1375 = vmatprep.mubr.f32.mxu0 0.0
        %1376 = vmatmul.mubr.f32.gmra.mrb[0].mxu0 %v1235
        %v1377 = vpop.f32.mrb[0].mxu0
        %v1378 = vadd.f32 %v1280, %v1377
        %v1379 = vpop.f32.mrb[0].mxu0
        %1380 = vmatprep.mubr.f32.mxu0 0.0
        %1381 = vmatmul.mubr.f32.gmra.mrb[0].mxu0 %v1236
        %v1382 = vpop.f32.mrb[0].mxu0
        %v1383 = vadd.f32 %v1280, %v1382
        %v1384 = vpop.f32.mrb[0].mxu0
        %1385 = vmatprep.mubr.f32.mxu0 0.0
        %1386 = vmatmul.mubr.f32.gmra.mrb[0].mxu0 %v1237
        %v1387 = vpop.f32.mrb[0].mxu0
        %v1388 = vadd.f32 %v1280, %v1387
        %v1389 = vpop.f32.mrb[0].mxu0
        %1390 = vmatprep.mubr.f32.mxu0 0.0
        %1391 = vmatmul.mubr.f32.gmra.mrb[0].mxu0 %v1238
        %v1392 = vpop.f32.mrb[0].mxu0
        %v1393 = vadd.f32 %v1280, %v1392
        %v1394 = vpop.f32.mrb[0].mxu0
        %1395 = vmatprep.mubr.f32.mxu0 0.0
        %1396 = vmatmul.mubr.f32.gmra.mrb[0].mxu0 %v1239
        %v1397 = vpop.f32.mrb[0].mxu0
        %v1398 = vadd.f32 %v1280, %v1397
        %v1399 = vpop.f32.mrb[0].mxu0
        %1400 = vmatprep.mubr.f32.mxu0 0.0
        %1401 = vmatmul.mubr.f32.gmra.mrb[0].mxu0 %v1240
        %v1402 = vpop.f32.mrb[0].mxu0
        %v1403 = vadd.f32 %v1280, %v1402
        %v1404 = vpop.f32.mrb[0].mxu0
        %1405 = vmatprep.mubr.f32.mxu0 0.0
        %1406 = vmatmul.mubr.f32.gmra.mrb[0].mxu0 %v1241
        %v1407 = vpop.f32.mrb[0].mxu0
        %v1408 = vadd.f32 %v1280, %v1407
        %v1409 = vpop.f32.mrb[0].mxu0
        %1410 = vmatprep.mubr.f32.mxu0 0.0
        %1411 = vmatmul.mubr.f32.gmra.mrb[0].mxu0 %v1242
        %v1412 = vpop.f32.mrb[0].mxu0
        %v1413 = vadd.f32 %v1280, %v1412
        %v1414 = vpop.f32.mrb[0].mxu0
        %1415 = vmatprep.mubr.f32.mxu0 0.0
        %1416 = vmatmul.mubr.f32.gmra.mrb[0].mxu0 %v1243
        %v1417 = vpop.f32.mrb[0].mxu0
        %v1418 = vadd.f32 %v1280, %v1417
        %v1419 = vpop.f32.mrb[0].mxu0
        %1420 = vmatprep.mubr.f32.mxu0 0.0
        %1421 = vmatmul.mubr.f32.gmra.mrb[0].mxu0 %v1244
        %v1422 = vpop.f32.mrb[0].mxu0
        %v1423 = vadd.f32 %v1280, %v1422
        %v1424 = vpop.f32.mrb[0].mxu0
        %1425 = vmatprep.mubr.f32.mxu0 0.0
        %1426 = vmatmul.mubr.f32.gmra.mrb[0].mxu0 %v1245
        %v1427 = vpop.f32.mrb[0].mxu0
        %v1428 = vadd.f32 %v1280, %v1427
        %v1429 = vpop.f32.mrb[0].mxu0
        %1430 = vmatprep.mubr.f32.mxu0 0.0
        %1431 = vmatmul.mubr.f32.gmra.mrb[0].mxu0 %v1246
        %v1432 = vpop.f32.mrb[0].mxu0
        %v1433 = vadd.f32 %v1280, %v1432
        %v1434 = vpop.f32.mrb[0].mxu0
        %1435 = vmatprep.mubr.f32.mxu0 0.0
        %1436 = vmatmul.mubr.f32.gmra.mrb[0].mxu0 %v1247
        %v1437 = vpop.f32.mrb[0].mxu0
        %v1438 = vadd.f32 %v1280, %v1437
        %v1439 = vpop.f32.mrb[0].mxu0
        %1440 = vmatprep.mubr.f32.mxu0 0.0
        %1441 = vmatmul.mubr.f32.gmra.mrb[0].mxu0 %v1248
        %v1442 = vpop.f32.mrb[0].mxu0
        %v1443 = vadd.f32 %v1280, %v1442
        %v1444 = vpop.f32.mrb[0].mxu0
        %1445 = vmatprep.mubr.f32.mxu0 0.0
        %1446 = vmatmul.mubr.f32.gmra.mrb[0].mxu0 %v1249
        %v1447 = vpop.f32.mrb[0].mxu0
        %v1448 = vadd.f32 %v1280, %v1447
        %v1449 = vpop.f32.mrb[0].mxu0
        %1450 = vmatprep.mubr.f32.mxu0 0.0
        %1451 = vmatmul.mubr.f32.gmra.mrb[0].mxu0 %v1250
        %v1452 = vpop.f32.mrb[0].mxu0
        %v1453 = vadd.f32 %v1280, %v1452
        %v1454 = vpop.f32.mrb[0].mxu0
        %1455 = vmatprep.mubr.f32.mxu0 0.0
        %1456 = vmatmul.mubr.f32.gmra.mrb[0].mxu0 %v1251
        %v1457 = vpop.f32.mrb[0].mxu0
        %v1458 = vadd.f32 %v1280, %v1457
        %v1459 = vpop.f32.mrb[0].mxu0
        %1460 = vmatprep.mubr.f32.mxu0 0.0
        %1461 = vmatmul.mubr.f32.gmra.mrb[0].mxu0 %v1252
        %v1462 = vpop.f32.mrb[0].mxu0
        %v1463 = vadd.f32 %v1280, %v1462
        %v1464 = vpop.f32.mrb[0].mxu0
        %1465 = vmatprep.mubr.f32.mxu0 0.0
        %1466 = vmatmul.mubr.f32.gmra.mrb[0].mxu0 %v1253
        %v1467 = vpop.f32.mrb[0].mxu0
        %v1468 = vadd.f32 %v1280, %v1467
        %v1469 = vpop.f32.mrb[0].mxu0
        %1470 = vmatprep.mubr.f32.mxu0 0.0
        %1471 = vmatmul.mubr.f32.gmra.mrb[0].mxu0 %v1254
        %v1472 = vpop.f32.mrb[0].mxu0
        %v1473 = vadd.f32 %v1280, %v1472
        %v1474 = vpop.f32.mrb[0].mxu0
        %1475 = vmatprep.mubr.f32.mxu0 0.0
        %1476 = vmatmul.mubr.f32.gmra.mrb[0].mxu0 %v1255
        %v1477 = vpop.f32.mrb[0].mxu0
        %v1478 = vadd.f32 %v1280, %v1477
        %v1479 = vpop.f32.mrb[0].mxu0
        %1480 = vmatprep.mubr.f32.mxu0 0.0
        %1481 = vmatmul.mubr.f32.gmra.mrb[0].mxu0 %v1256
        %v1482 = vpop.f32.mrb[0].mxu0
        %v1483 = vadd.f32 %v1280, %v1482
        %v1484 = vpop.f32.mrb[0].mxu0
        %1485 = vmatprep.mubr.f32.mxu0 0.0
        %1486 = vmatmul.mubr.f32.gmra.mrb[0].mxu0 %v1257
        %v1487 = vpop.f32.mrb[0].mxu0
        %v1488 = vadd.f32 %v1280, %v1487
        %v1489 = vpop.f32.mrb[0].mxu0
        %1490 = vmatprep.mubr.f32.mxu0 0.0
        %1491 = vmatmul.mubr.f32.gmra.mrb[0].mxu0 %v1258
        %v1492 = vpop.f32.mrb[0].mxu0
        %v1493 = vadd.f32 %v1280, %v1492
        %v1494 = vpop.f32.mrb[0].mxu0
        %1495 = vmatprep.mubr.f32.mxu0 0.0
        %1496 = vmatmul.mubr.f32.gmra.mrb[0].mxu0 %v1259
        %v1497 = vpop.f32.mrb[0].mxu0
        %v1498 = vadd.f32 %v1280, %v1497
        %v1499 = vpop.f32.mrb[0].mxu0
        %1500 = vmatprep.mubr.f32.mxu0 0.0
        %1501 = vmatmul.mubr.f32.gmra.mrb[0].mxu0 %v1260
        %v1502 = vpop.f32.mrb[0].mxu0
        %v1503 = vadd.f32 %v1280, %v1502
        %v1504 = vpop.f32.mrb[0].mxu0
        %1505 = vdwg.mxu0
        %v1506 = vmul.f32 %v1348, 0.5
        %v1507 = vmul.f32 %v1353, 0.5
        %v1508 = vmul.f32 %v1358, 0.5
        %v1509 = vmul.f32 %v1363, 0.5
        %v1510 = vmul.f32 %v1368, 0.5
        %v1511 = vmul.f32 %v1373, 0.5
        %v1512 = vmul.f32 %v1378, 0.5
        %v1513 = vmul.f32 %v1383, 0.5
        %v1514 = vmul.f32 %v1388, 0.5
        %v1515 = vmul.f32 %v1393, 0.5
        %v1516 = vmul.f32 %v1398, 0.5
        %v1517 = vmul.f32 %v1403, 0.5
        %v1518 = vmul.f32 %v1408, 0.5
        %v1519 = vmul.f32 %v1413, 0.5
        %v1520 = vmul.f32 %v1418, 0.5
        %v1521 = vmul.f32 %v1423, 0.5
        %v1522 = vmul.f32 %v1428, 0.5
        %v1523 = vmul.f32 %v1433, 0.5
        %v1524 = vmul.f32 %v1438, 0.5
        %v1525 = vmul.f32 %v1443, 0.5
        %v1526 = vmul.f32 %v1448, 0.5
        %v1527 = vmul.f32 %v1453, 0.5
        %v1528 = vmul.f32 %v1458, 0.5
        %v1529 = vmul.f32 %v1463, 0.5
        %v1530 = vmul.f32 %v1468, 0.5
        %v1531 = vmul.f32 %v1473, 0.5
        %v1532 = vmul.f32 %v1478, 0.5
        %v1533 = vmul.f32 %v1483, 0.5
        %v1534 = vmul.f32 %v1488, 0.5
        %v1535 = vmul.f32 %v1493, 0.5
        %v1536 = vmul.f32 %v1498, 0.5
        %v1537 = vmul.f32 %v1503, 0.5
        %v1538 = vmul.f32 %v1348, 0.70710677
        %v1539 = vmul.f32 %v1353, 0.70710677
        %v1540 = vmul.f32 %v1358, 0.70710677
        %v1541 = vmul.f32 %v1363, 0.70710677
        %v1542 = vmul.f32 %v1368, 0.70710677
        %v1543 = vmul.f32 %v1373, 0.70710677
        %v1544 = vmul.f32 %v1378, 0.70710677
        %v1545 = vmul.f32 %v1383, 0.70710677
        %v1546 = vmul.f32 %v1388, 0.70710677
        %v1547 = vmul.f32 %v1393, 0.70710677
        %v1548 = vmul.f32 %v1398, 0.70710677
        %v1549 = vmul.f32 %v1403, 0.70710677
        %v1550 = vmul.f32 %v1408, 0.70710677
        %v1551 = vmul.f32 %v1413, 0.70710677
        %v1552 = vmul.f32 %v1418, 0.70710677
        %v1553 = vmul.f32 %v1423, 0.70710677
        %v1554 = vmul.f32 %v1428, 0.70710677
        %v1555 = vmul.f32 %v1433, 0.70710677
        %v1556 = vmul.f32 %v1438, 0.70710677
        %v1557 = vmul.f32 %v1443, 0.70710677
        %v1558 = vmul.f32 %v1448, 0.70710677
        %v1559 = vmul.f32 %v1453, 0.70710677
        %v1560 = vmul.f32 %v1458, 0.70710677
        %v1561 = vmul.f32 %v1463, 0.70710677
        %v1562 = vmul.f32 %v1468, 0.70710677
        %v1563 = vmul.f32 %v1473, 0.70710677
        %v1564 = vmul.f32 %v1478, 0.70710677
        %v1565 = vmul.f32 %v1483, 0.70710677
        %v1566 = vmul.f32 %v1488, 0.70710677
        %v1567 = vmul.f32 %v1493, 0.70710677
        %v1568 = vmul.f32 %v1498, 0.70710677
        %v1569 = vmul.f32 %v1503, 0.70710677
        %v1570 = verf.f32.pop %v1538
        %v1571 = verf.f32.pop %v1539
        %v1572 = verf.f32.pop %v1540
        %v1573 = verf.f32.pop %v1541
        %v1574 = verf.f32.pop %v1542
        %v1575 = verf.f32.pop %v1543
        %v1576 = verf.f32.pop %v1544
        %v1577 = verf.f32.pop %v1545
        %v1578 = verf.f32.pop %v1546
        %v1579 = verf.f32.pop %v1547
        %v1580 = verf.f32.pop %v1548
        %v1581 = verf.f32.pop %v1549
        %v1582 = verf.f32.pop %v1550
        %v1583 = verf.f32.pop %v1551
        %v1584 = verf.f32.pop %v1552
        %v1585 = verf.f32.pop %v1553
        %v1586 = verf.f32.pop %v1554
        %v1587 = verf.f32.pop %v1555
        %v1588 = verf.f32.pop %v1556
        %v1589 = verf.f32.pop %v1557
        %v1590 = verf.f32.pop %v1558
        %v1591 = verf.f32.pop %v1559
        %v1592 = verf.f32.pop %v1560
        %v1593 = verf.f32.pop %v1561
        %v1594 = verf.f32.pop %v1562
        %v1595 = verf.f32.pop %v1563
        %v1596 = verf.f32.pop %v1564
        %v1597 = verf.f32.pop %v1565
        %v1598 = verf.f32.pop %v1566
        %v1599 = verf.f32.pop %v1567
        %v1600 = verf.f32.pop %v1568
        %v1601 = verf.f32.pop %v1569
        %v1602 = vadd.f32 %v1570, 1.0
        %v1603 = vadd.f32 %v1571, 1.0
        %v1604 = vadd.f32 %v1572, 1.0
        %v1605 = vadd.f32 %v1573, 1.0
        %v1606 = vadd.f32 %v1574, 1.0
        %v1607 = vadd.f32 %v1575, 1.0
        %v1608 = vadd.f32 %v1576, 1.0
        %v1609 = vadd.f32 %v1577, 1.0
        %v1610 = vadd.f32 %v1578, 1.0
        %v1611 = vadd.f32 %v1579, 1.0
        %v1612 = vadd.f32 %v1580, 1.0
        %v1613 = vadd.f32 %v1581, 1.0
        %v1614 = vadd.f32 %v1582, 1.0
        %v1615 = vadd.f32 %v1583, 1.0
        %v1616 = vadd.f32 %v1584, 1.0
        %v1617 = vadd.f32 %v1585, 1.0
        %v1618 = vadd.f32 %v1586, 1.0
        %v1619 = vadd.f32 %v1587, 1.0
        %v1620 = vadd.f32 %v1588, 1.0
        %v1621 = vadd.f32 %v1589, 1.0
        %v1622 = vadd.f32 %v1590, 1.0
        %v1623 = vadd.f32 %v1591, 1.0
        %v1624 = vadd.f32 %v1592, 1.0
        %v1625 = vadd.f32 %v1593, 1.0
        %v1626 = vadd.f32 %v1594, 1.0
        %v1627 = vadd.f32 %v1595, 1.0
        %v1628 = vadd.f32 %v1596, 1.0
        %v1629 = vadd.f32 %v1597, 1.0
        %v1630 = vadd.f32 %v1598, 1.0
        %v1631 = vadd.f32 %v1599, 1.0
        %v1632 = vadd.f32 %v1600, 1.0
        %v1633 = vadd.f32 %v1601, 1.0
        %v1634 = vmul.f32 %v1506, %v1602
        %v1635 = vmul.f32 %v1507, %v1603
        %v1636 = vmul.f32 %v1508, %v1604
        %v1637 = vmul.f32 %v1509, %v1605
        %v1638 = vmul.f32 %v1510, %v1606
        %v1639 = vmul.f32 %v1511, %v1607
        %v1640 = vmul.f32 %v1512, %v1608
        %v1641 = vmul.f32 %v1513, %v1609
        %v1642 = vmul.f32 %v1514, %v1610
        %v1643 = vmul.f32 %v1515, %v1611
        %v1644 = vmul.f32 %v1516, %v1612
        %v1645 = vmul.f32 %v1517, %v1613
        %v1646 = vmul.f32 %v1518, %v1614
        %v1647 = vmul.f32 %v1519, %v1615
        %v1648 = vmul.f32 %v1520, %v1616
        %v1649 = vmul.f32 %v1521, %v1617
        %v1650 = vmul.f32 %v1522, %v1618
        %v1651 = vmul.f32 %v1523, %v1619
        %v1652 = vmul.f32 %v1524, %v1620
        %v1653 = vmul.f32 %v1525, %v1621
        %v1654 = vmul.f32 %v1526, %v1622
        %v1655 = vmul.f32 %v1527, %v1623
        %v1656 = vmul.f32 %v1528, %v1624
        %v1657 = vmul.f32 %v1529, %v1625
        %v1658 = vmul.f32 %v1530, %v1626
        %v1659 = vmul.f32 %v1531, %v1627
        %v1660 = vmul.f32 %v1532, %v1628
        %v1661 = vmul.f32 %v1533, %v1629
        %v1662 = vmul.f32 %v1534, %v1630
        %v1663 = vmul.f32 %v1535, %v1631
        %v1664 = vmul.f32 %v1536, %v1632
        %v1665 = vmul.f32 %v1537, %v1633
        %1666 = vadd.xlane.f32.xlu0 %v1634
        %v1667 = vpop.xlane.xlu0 %1666
        %1668 = vadd.xlane.f32.xlu0 %v1635
        %v1669 = vpop.xlane.xlu0 %1668
        %1670 = vadd.xlane.f32.xlu0 %v1636
        %v1671 = vpop.xlane.xlu0 %1670
        %1672 = vadd.xlane.f32.xlu0 %v1637
        %v1673 = vpop.xlane.xlu0 %1672
        %1674 = vadd.xlane.f32.xlu0 %v1638
        %v1675 = vpop.xlane.xlu0 %1674
        %1676 = vadd.xlane.f32.xlu0 %v1639
        %v1677 = vpop.xlane.xlu0 %1676
        %1678 = vadd.xlane.f32.xlu0 %v1640
        %v1679 = vpop.xlane.xlu0 %1678
        %1680 = vadd.xlane.f32.xlu0 %v1641
        %v1681 = vpop.xlane.xlu0 %1680
        %1682 = vadd.xlane.f32.xlu0 %v1642
        %v1683 = vpop.xlane.xlu0 %1682
        %1684 = vadd.xlane.f32.xlu0 %v1643
        %v1685 = vpop.xlane.xlu0 %1684
        %1686 = vadd.xlane.f32.xlu0 %v1644
        %v1687 = vpop.xlane.xlu0 %1686
        %1688 = vadd.xlane.f32.xlu0 %v1645
        %v1689 = vpop.xlane.xlu0 %1688
        %1690 = vadd.xlane.f32.xlu0 %v1646
        %v1691 = vpop.xlane.xlu0 %1690
        %1692 = vadd.xlane.f32.xlu0 %v1647
        %v1693 = vpop.xlane.xlu0 %1692
        %1694 = vadd.xlane.f32.xlu0 %v1648
        %v1695 = vpop.xlane.xlu0 %1694
        %1696 = vadd.xlane.f32.xlu0 %v1649
        %v1697 = vpop.xlane.xlu0 %1696
        %1698 = vadd.xlane.f32.xlu0 %v1650
        %v1699 = vpop.xlane.xlu0 %1698
        %1700 = vadd.xlane.f32.xlu0 %v1651
        %v1701 = vpop.xlane.xlu0 %1700
        %1702 = vadd.xlane.f32.xlu0 %v1652
        %v1703 = vpop.xlane.xlu0 %1702
        %1704 = vadd.xlane.f32.xlu0 %v1653
        %v1705 = vpop.xlane.xlu0 %1704
        %1706 = vadd.xlane.f32.xlu0 %v1654
        %v1707 = vpop.xlane.xlu0 %1706
        %1708 = vadd.xlane.f32.xlu0 %v1655
        %v1709 = vpop.xlane.xlu0 %1708
        %1710 = vadd.xlane.f32.xlu0 %v1656
        %v1711 = vpop.xlane.xlu0 %1710
        %1712 = vadd.xlane.f32.xlu0 %v1657
        %v1713 = vpop.xlane.xlu0 %1712
        %1714 = vadd.xlane.f32.xlu0 %v1658
        %v1715 = vpop.xlane.xlu0 %1714
        %1716 = vadd.xlane.f32.xlu0 %v1659
        %v1717 = vpop.xlane.xlu0 %1716
        %1718 = vadd.xlane.f32.xlu0 %v1660
        %v1719 = vpop.xlane.xlu0 %1718
        %1720 = vadd.xlane.f32.xlu0 %v1661
        %v1721 = vpop.xlane.xlu0 %1720
        %1722 = vadd.xlane.f32.xlu0 %v1662
        %v1723 = vpop.xlane.xlu0 %1722
        %1724 = vadd.xlane.f32.xlu0 %v1663
        %v1725 = vpop.xlane.xlu0 %1724
        %1726 = vadd.xlane.f32.xlu0 %v1664
        %v1727 = vpop.xlane.xlu0 %1726
        %1728 = vadd.xlane.f32.xlu0 %v1665
        %v1729 = vpop.xlane.xlu0 %1728
        %v1730 = vmul.f32 %v1634, %v1634
        %v1731 = vmul.f32 %v1635, %v1635
        %v1732 = vmul.f32 %v1636, %v1636
        %v1733 = vmul.f32 %v1637, %v1637
        %v1734 = vmul.f32 %v1638, %v1638
        %v1735 = vmul.f32 %v1639, %v1639
        %v1736 = vmul.f32 %v1640, %v1640
        %v1737 = vmul.f32 %v1641, %v1641
        %v1738 = vmul.f32 %v1642, %v1642
        %v1739 = vmul.f32 %v1643, %v1643
        %v1740 = vmul.f32 %v1644, %v1644
        %v1741 = vmul.f32 %v1645, %v1645
        %v1742 = vmul.f32 %v1646, %v1646
        %v1743 = vmul.f32 %v1647, %v1647
        %v1744 = vmul.f32 %v1648, %v1648
        %v1745 = vmul.f32 %v1649, %v1649
        %v1746 = vmul.f32 %v1650, %v1650
        %v1747 = vmul.f32 %v1651, %v1651
        %v1748 = vmul.f32 %v1652, %v1652
        %v1749 = vmul.f32 %v1653, %v1653
        %v1750 = vmul.f32 %v1654, %v1654
        %v1751 = vmul.f32 %v1655, %v1655
        %v1752 = vmul.f32 %v1656, %v1656
        %v1753 = vmul.f32 %v1657, %v1657
        %v1754 = vmul.f32 %v1658, %v1658
        %v1755 = vmul.f32 %v1659, %v1659
        %v1756 = vmul.f32 %v1660, %v1660
        %v1757 = vmul.f32 %v1661, %v1661
        %v1758 = vmul.f32 %v1662, %v1662
        %v1759 = vmul.f32 %v1663, %v1663
        %v1760 = vmul.f32 %v1664, %v1664
        %v1761 = vmul.f32 %v1665, %v1665
        %1762 = vadd.xlane.f32.xlu0 %v1730
        %v1763 = vpop.xlane.xlu0 %1762
        %1764 = vadd.xlane.f32.xlu0 %v1731
        %v1765 = vpop.xlane.xlu0 %1764
        %1766 = vadd.xlane.f32.xlu0 %v1732
        %v1767 = vpop.xlane.xlu0 %1766
        %1768 = vadd.xlane.f32.xlu0 %v1733
        %v1769 = vpop.xlane.xlu0 %1768
        %1770 = vadd.xlane.f32.xlu0 %v1734
        %v1771 = vpop.xlane.xlu0 %1770
        %1772 = vadd.xlane.f32.xlu0 %v1735
        %v1773 = vpop.xlane.xlu0 %1772
        %1774 = vadd.xlane.f32.xlu0 %v1736
        %v1775 = vpop.xlane.xlu0 %1774
        %1776 = vadd.xlane.f32.xlu0 %v1737
        %v1777 = vpop.xlane.xlu0 %1776
        %1778 = vadd.xlane.f32.xlu0 %v1738
        %v1779 = vpop.xlane.xlu0 %1778
        %1780 = vadd.xlane.f32.xlu0 %v1739
        %v1781 = vpop.xlane.xlu0 %1780
        %1782 = vadd.xlane.f32.xlu0 %v1740
        %v1783 = vpop.xlane.xlu0 %1782
        %1784 = vadd.xlane.f32.xlu0 %v1741
        %v1785 = vpop.xlane.xlu0 %1784
        %1786 = vadd.xlane.f32.xlu0 %v1742
        %v1787 = vpop.xlane.xlu0 %1786
        %1788 = vadd.xlane.f32.xlu0 %v1743
        %v1789 = vpop.xlane.xlu0 %1788
        %1790 = vadd.xlane.f32.xlu0 %v1744
        %v1791 = vpop.xlane.xlu0 %1790
        %1792 = vadd.xlane.f32.xlu0 %v1745
        %v1793 = vpop.xlane.xlu0 %1792
        %1794 = vadd.xlane.f32.xlu0 %v1746
        %v1795 = vpop.xlane.xlu0 %1794
        %1796 = vadd.xlane.f32.xlu0 %v1747
        %v1797 = vpop.xlane.xlu0 %1796
        %1798 = vadd.xlane.f32.xlu0 %v1748
        %v1799 = vpop.xlane.xlu0 %1798
        %1800 = vadd.xlane.f32.xlu0 %v1749
        %v1801 = vpop.xlane.xlu0 %1800
        %1802 = vadd.xlane.f32.xlu0 %v1750
        %v1803 = vpop.xlane.xlu0 %1802
        %1804 = vadd.xlane.f32.xlu0 %v1751
        %v1805 = vpop.xlane.xlu0 %1804
        %1806 = vadd.xlane.f32.xlu0 %v1752
        %v1807 = vpop.xlane.xlu0 %1806
        %1808 = vadd.xlane.f32.xlu0 %v1753
        %v1809 = vpop.xlane.xlu0 %1808
        %1810 = vadd.xlane.f32.xlu0 %v1754
        %v1811 = vpop.xlane.xlu0 %1810
        %1812 = vadd.xlane.f32.xlu0 %v1755
        %v1813 = vpop.xlane.xlu0 %1812
        %1814 = vadd.xlane.f32.xlu0 %v1756
        %v1815 = vpop.xlane.xlu0 %1814
        %1816 = vadd.xlane.f32.xlu0 %v1757
        %v1817 = vpop.xlane.xlu0 %1816
        %1818 = vadd.xlane.f32.xlu0 %v1758
        %v1819 = vpop.xlane.xlu0 %1818
        %1820 = vadd.xlane.f32.xlu0 %v1759
        %v1821 = vpop.xlane.xlu0 %1820
        %1822 = vadd.xlane.f32.xlu0 %v1760
        %v1823 = vpop.xlane.xlu0 %1822
        %1824 = vadd.xlane.f32.xlu0 %v1761
        %v1825 = vpop.xlane.xlu0 %1824
        %v1826 = vmul.f32 %v1667, 0.0078125
        %v1827 = vmul.f32 %v1669, 0.0078125
        %v1828 = vmul.f32 %v1671, 0.0078125
        %v1829 = vmul.f32 %v1673, 0.0078125
        %v1830 = vmul.f32 %v1675, 0.0078125
        %v1831 = vmul.f32 %v1677, 0.0078125
        %v1832 = vmul.f32 %v1679, 0.0078125
        %v1833 = vmul.f32 %v1681, 0.0078125
        %v1834 = vmul.f32 %v1683, 0.0078125
        %v1835 = vmul.f32 %v1685, 0.0078125
        %v1836 = vmul.f32 %v1687, 0.0078125
        %v1837 = vmul.f32 %v1689, 0.0078125
        %v1838 = vmul.f32 %v1691, 0.0078125
        %v1839 = vmul.f32 %v1693, 0.0078125
        %v1840 = vmul.f32 %v1695, 0.0078125
        %v1841 = vmul.f32 %v1697, 0.0078125
        %v1842 = vmul.f32 %v1699, 0.0078125
        %v1843 = vmul.f32 %v1701, 0.0078125
        %v1844 = vmul.f32 %v1703, 0.0078125
        %v1845 = vmul.f32 %v1705, 0.0078125
        %v1846 = vmul.f32 %v1707, 0.0078125
        %v1847 = vmul.f32 %v1709, 0.0078125
        %v1848 = vmul.f32 %v1711, 0.0078125
        %v1849 = vmul.f32 %v1713, 0.0078125
        %v1850 = vmul.f32 %v1715, 0.0078125
        %v1851 = vmul.f32 %v1717, 0.0078125
        %v1852 = vmul.f32 %v1719, 0.0078125
        %v1853 = vmul.f32 %v1721, 0.0078125
        %v1854 = vmul.f32 %v1723, 0.0078125
        %v1855 = vmul.f32 %v1725, 0.0078125
        %v1856 = vmul.f32 %v1727, 0.0078125
        %v1857 = vmul.f32 %v1729, 0.0078125
        %v1858 = vmul.f32 %v1763, 0.0078125
        %v1859 = vmul.f32 %v1765, 0.0078125
        %v1860 = vmul.f32 %v1767, 0.0078125
        %v1861 = vmul.f32 %v1769, 0.0078125
        %v1862 = vmul.f32 %v1771, 0.0078125
        %v1863 = vmul.f32 %v1773, 0.0078125
        %v1864 = vmul.f32 %v1775, 0.0078125
        %v1865 = vmul.f32 %v1777, 0.0078125
        %v1866 = vmul.f32 %v1779, 0.0078125
        %v1867 = vmul.f32 %v1781, 0.0078125
        %v1868 = vmul.f32 %v1783, 0.0078125
        %v1869 = vmul.f32 %v1785, 0.0078125
        %v1870 = vmul.f32 %v1787, 0.0078125
        %v1871 = vmul.f32 %v1789, 0.0078125
        %v1872 = vmul.f32 %v1791, 0.0078125
        %v1873 = vmul.f32 %v1793, 0.0078125
        %v1874 = vmul.f32 %v1795, 0.0078125
        %v1875 = vmul.f32 %v1797, 0.0078125
        %v1876 = vmul.f32 %v1799, 0.0078125
        %v1877 = vmul.f32 %v1801, 0.0078125
        %v1878 = vmul.f32 %v1803, 0.0078125
        %v1879 = vmul.f32 %v1805, 0.0078125
        %v1880 = vmul.f32 %v1807, 0.0078125
        %v1881 = vmul.f32 %v1809, 0.0078125
        %v1882 = vmul.f32 %v1811, 0.0078125
        %v1883 = vmul.f32 %v1813, 0.0078125
        %v1884 = vmul.f32 %v1815, 0.0078125
        %v1885 = vmul.f32 %v1817, 0.0078125
        %v1886 = vmul.f32 %v1819, 0.0078125
        %v1887 = vmul.f32 %v1821, 0.0078125
        %v1888 = vmul.f32 %v1823, 0.0078125
        %v1889 = vmul.f32 %v1825, 0.0078125
        %v1890 = vmul.f32 %v1826, %v1826
        %v1891 = vmul.f32 %v1827, %v1827
        %v1892 = vmul.f32 %v1828, %v1828
        %v1893 = vmul.f32 %v1829, %v1829
        %v1894 = vmul.f32 %v1830, %v1830
        %v1895 = vmul.f32 %v1831, %v1831
        %v1896 = vmul.f32 %v1832, %v1832
        %v1897 = vmul.f32 %v1833, %v1833
        %v1898 = vmul.f32 %v1834, %v1834
        %v1899 = vmul.f32 %v1835, %v1835
        %v1900 = vmul.f32 %v1836, %v1836
        %v1901 = vmul.f32 %v1837, %v1837
        %v1902 = vmul.f32 %v1838, %v1838
        %v1903 = vmul.f32 %v1839, %v1839
        %v1904 = vmul.f32 %v1840, %v1840
        %v1905 = vmul.f32 %v1841, %v1841
        %v1906 = vmul.f32 %v1842, %v1842
        %v1907 = vmul.f32 %v1843, %v1843
        %v1908 = vmul.f32 %v1844, %v1844
        %v1909 = vmul.f32 %v1845, %v1845
        %v1910 = vmul.f32 %v1846, %v1846
        %v1911 = vmul.f32 %v1847, %v1847
        %v1912 = vmul.f32 %v1848, %v1848
        %v1913 = vmul.f32 %v1849, %v1849
        %v1914 = vmul.f32 %v1850, %v1850
        %v1915 = vmul.f32 %v1851, %v1851
        %v1916 = vmul.f32 %v1852, %v1852
        %v1917 = vmul.f32 %v1853, %v1853
        %v1918 = vmul.f32 %v1854, %v1854
        %v1919 = vmul.f32 %v1855, %v1855
        %v1920 = vmul.f32 %v1856, %v1856
        %v1921 = vmul.f32 %v1857, %v1857
        %v1922 = vsub.f32 %v1858, %v1890
        %v1923 = vsub.f32 %v1859, %v1891
        %v1924 = vsub.f32 %v1860, %v1892
        %v1925 = vsub.f32 %v1861, %v1893
        %v1926 = vsub.f32 %v1862, %v1894
        %v1927 = vsub.f32 %v1863, %v1895
        %v1928 = vsub.f32 %v1864, %v1896
        %v1929 = vsub.f32 %v1865, %v1897
        %v1930 = vsub.f32 %v1866, %v1898
        %v1931 = vsub.f32 %v1867, %v1899
        %v1932 = vsub.f32 %v1868, %v1900
        %v1933 = vsub.f32 %v1869, %v1901
        %v1934 = vsub.f32 %v1870, %v1902
        %v1935 = vsub.f32 %v1871, %v1903
        %v1936 = vsub.f32 %v1872, %v1904
        %v1937 = vsub.f32 %v1873, %v1905
        %v1938 = vsub.f32 %v1874, %v1906
        %v1939 = vsub.f32 %v1875, %v1907
        %v1940 = vsub.f32 %v1876, %v1908
        %v1941 = vsub.f32 %v1877, %v1909
        %v1942 = vsub.f32 %v1878, %v1910
        %v1943 = vsub.f32 %v1879, %v1911
        %v1944 = vsub.f32 %v1880, %v1912
        %v1945 = vsub.f32 %v1881, %v1913
        %v1946 = vsub.f32 %v1882, %v1914
        %v1947 = vsub.f32 %v1883, %v1915
        %v1948 = vsub.f32 %v1884, %v1916
        %v1949 = vsub.f32 %v1885, %v1917
        %v1950 = vsub.f32 %v1886, %v1918
        %v1951 = vsub.f32 %v1887, %v1919
        %v1952 = vsub.f32 %v1888, %v1920
        %v1953 = vsub.f32 %v1889, %v1921
        %v1954 = vsub.f32 %v1634, %v1826
        %v1955 = vsub.f32 %v1635, %v1827
        %v1956 = vsub.f32 %v1636, %v1828
        %v1957 = vsub.f32 %v1637, %v1829
        %v1958 = vsub.f32 %v1638, %v1830
        %v1959 = vsub.f32 %v1639, %v1831
        %v1960 = vsub.f32 %v1640, %v1832
        %v1961 = vsub.f32 %v1641, %v1833
        %v1962 = vsub.f32 %v1642, %v1834
        %v1963 = vsub.f32 %v1643, %v1835
        %v1964 = vsub.f32 %v1644, %v1836
        %v1965 = vsub.f32 %v1645, %v1837
        %v1966 = vsub.f32 %v1646, %v1838
        %v1967 = vsub.f32 %v1647, %v1839
        %v1968 = vsub.f32 %v1648, %v1840
        %v1969 = vsub.f32 %v1649, %v1841
        %v1970 = vsub.f32 %v1650, %v1842
        %v1971 = vsub.f32 %v1651, %v1843
        %v1972 = vsub.f32 %v1652, %v1844
        %v1973 = vsub.f32 %v1653, %v1845
        %v1974 = vsub.f32 %v1654, %v1846
        %v1975 = vsub.f32 %v1655, %v1847
        %v1976 = vsub.f32 %v1656, %v1848
        %v1977 = vsub.f32 %v1657, %v1849
        %v1978 = vsub.f32 %v1658, %v1850
        %v1979 = vsub.f32 %v1659, %v1851
        %v1980 = vsub.f32 %v1660, %v1852
        %v1981 = vsub.f32 %v1661, %v1853
        %v1982 = vsub.f32 %v1662, %v1854
        %v1983 = vsub.f32 %v1663, %v1855
        %v1984 = vsub.f32 %v1664, %v1856
        %v1985 = vsub.f32 %v1665, %v1857
        %v1986 = vadd.f32 %v1922, 1e-05
        %v1987 = vadd.f32 %v1923, 1e-05
        %v1988 = vadd.f32 %v1924, 1e-05
        %v1989 = vadd.f32 %v1925, 1e-05
        %v1990 = vadd.f32 %v1926, 1e-05
        %v1991 = vadd.f32 %v1927, 1e-05
        %v1992 = vadd.f32 %v1928, 1e-05
        %v1993 = vadd.f32 %v1929, 1e-05
        %v1994 = vadd.f32 %v1930, 1e-05
        %v1995 = vadd.f32 %v1931, 1e-05
        %v1996 = vadd.f32 %v1932, 1e-05
        %v1997 = vadd.f32 %v1933, 1e-05
        %v1998 = vadd.f32 %v1934, 1e-05
        %v1999 = vadd.f32 %v1935, 1e-05
        %v2000 = vadd.f32 %v1936, 1e-05
        %v2001 = vadd.f32 %v1937, 1e-05
        %v2002 = vadd.f32 %v1938, 1e-05
        %v2003 = vadd.f32 %v1939, 1e-05
        %v2004 = vadd.f32 %v1940, 1e-05
        %v2005 = vadd.f32 %v1941, 1e-05
        %v2006 = vadd.f32 %v1942, 1e-05
        %v2007 = vadd.f32 %v1943, 1e-05
        %v2008 = vadd.f32 %v1944, 1e-05
        %v2009 = vadd.f32 %v1945, 1e-05
        %v2010 = vadd.f32 %v1946, 1e-05
        %v2011 = vadd.f32 %v1947, 1e-05
        %v2012 = vadd.f32 %v1948, 1e-05
        %v2013 = vadd.f32 %v1949, 1e-05
        %v2014 = vadd.f32 %v1950, 1e-05
        %v2015 = vadd.f32 %v1951, 1e-05
        %v2016 = vadd.f32 %v1952, 1e-05
        %v2017 = vadd.f32 %v1953, 1e-05
        %v2018 = vrsqrt.pop %v1986
        %v2019 = vrsqrt.pop %v1987
        %v2020 = vrsqrt.pop %v1988
        %v2021 = vrsqrt.pop %v1989
        %v2022 = vrsqrt.pop %v1990
        %v2023 = vrsqrt.pop %v1991
        %v2024 = vrsqrt.pop %v1992
        %v2025 = vrsqrt.pop %v1993
        %v2026 = vrsqrt.pop %v1994
        %v2027 = vrsqrt.pop %v1995
        %v2028 = vrsqrt.pop %v1996
        %v2029 = vrsqrt.pop %v1997
        %v2030 = vrsqrt.pop %v1998
        %v2031 = vrsqrt.pop %v1999
        %v2032 = vrsqrt.pop %v2000
        %v2033 = vrsqrt.pop %v2001
        %v2034 = vrsqrt.pop %v2002
        %v2035 = vrsqrt.pop %v2003
        %v2036 = vrsqrt.pop %v2004
        %v2037 = vrsqrt.pop %v2005
        %v2038 = vrsqrt.pop %v2006
        %v2039 = vrsqrt.pop %v2007
        %v2040 = vrsqrt.pop %v2008
        %v2041 = vrsqrt.pop %v2009
        %v2042 = vrsqrt.pop %v2010
        %v2043 = vrsqrt.pop %v2011
        %v2044 = vrsqrt.pop %v2012
        %v2045 = vrsqrt.pop %v2013
        %v2046 = vrsqrt.pop %v2014
        %v2047 = vrsqrt.pop %v2015
        %v2048 = vrsqrt.pop %v2016
        %v2049 = vrsqrt.pop %v2017
        %v2050 = vmul.f32 %v1954, %v2018
        %v2051 = vmul.f32 %v1955, %v2019
        %v2052 = vmul.f32 %v1956, %v2020
        %v2053 = vmul.f32 %v1957, %v2021
        %v2054 = vmul.f32 %v1958, %v2022
        %v2055 = vmul.f32 %v1959, %v2023
        %v2056 = vmul.f32 %v1960, %v2024
        %v2057 = vmul.f32 %v1961, %v2025
        %v2058 = vmul.f32 %v1962, %v2026
        %v2059 = vmul.f32 %v1963, %v2027
        %v2060 = vmul.f32 %v1964, %v2028
        %v2061 = vmul.f32 %v1965, %v2029
        %v2062 = vmul.f32 %v1966, %v2030
        %v2063 = vmul.f32 %v1967, %v2031
        %v2064 = vmul.f32 %v1968, %v2032
        %v2065 = vmul.f32 %v1969, %v2033
        %v2066 = vmul.f32 %v1970, %v2034
        %v2067 = vmul.f32 %v1971, %v2035
        %v2068 = vmul.f32 %v1972, %v2036
        %v2069 = vmul.f32 %v1973, %v2037
        %v2070 = vmul.f32 %v1974, %v2038
        %v2071 = vmul.f32 %v1975, %v2039
        %v2072 = vmul.f32 %v1976, %v2040
        %v2073 = vmul.f32 %v1977, %v2041
        %v2074 = vmul.f32 %v1978, %v2042
        %v2075 = vmul.f32 %v1979, %v2043
        %v2076 = vmul.f32 %v1980, %v2044
        %v2077 = vmul.f32 %v1981, %v2045
        %v2078 = vmul.f32 %v1982, %v2046
        %v2079 = vmul.f32 %v1983, %v2047
        %v2080 = vmul.f32 %v1984, %v2048
        %v2081 = vmul.f32 %v1985, %v2049
        %v2082 = vlaneseq
        %v2083 = vshrl.u32 %v2082, 7
        %v2084 = vsub.s32 0, %v2083
        %v2085 = vrot.slane %v334, %v2084
        %v2086 = vmul.f32 %v2050, %v2085
        %v2087 = vmul.f32 %v2051, %v2085
        %v2088 = vmul.f32 %v2052, %v2085
        %v2089 = vmul.f32 %v2053, %v2085
        %v2090 = vmul.f32 %v2054, %v2085
        %v2091 = vmul.f32 %v2055, %v2085
        %v2092 = vmul.f32 %v2056, %v2085
        %v2093 = vmul.f32 %v2057, %v2085
        %v2094 = vmul.f32 %v2058, %v2085
        %v2095 = vmul.f32 %v2059, %v2085
        %v2096 = vmul.f32 %v2060, %v2085
        %v2097 = vmul.f32 %v2061, %v2085
        %v2098 = vmul.f32 %v2062, %v2085
        %v2099 = vmul.f32 %v2063, %v2085
        %v2100 = vmul.f32 %v2064, %v2085
        %v2101 = vmul.f32 %v2065, %v2085
        %v2102 = vmul.f32 %v2066, %v2085
        %v2103 = vmul.f32 %v2067, %v2085
        %v2104 = vmul.f32 %v2068, %v2085
        %v2105 = vmul.f32 %v2069, %v2085
        %v2106 = vmul.f32 %v2070, %v2085
        %v2107 = vmul.f32 %v2071, %v2085
        %v2108 = vmul.f32 %v2072, %v2085
        %v2109 = vmul.f32 %v2073, %v2085
        %v2110 = vmul.f32 %v2074, %v2085
        %v2111 = vmul.f32 %v2075, %v2085
        %v2112 = vmul.f32 %v2076, %v2085
        %v2113 = vmul.f32 %v2077, %v2085
        %v2114 = vmul.f32 %v2078, %v2085
        %v2115 = vmul.f32 %v2079, %v2085
        %v2116 = vmul.f32 %v2080, %v2085
        %v2117 = vmul.f32 %v2081, %v2085
        %v2118 = vlaneseq
        %v2119 = vshrl.u32 %v2118, 7
        %v2120 = vsub.s32 0, %v2119
        %v2121 = vrot.slane %v335, %v2120
        %v2122 = vadd.f32 %v2086, %v2121
        %v2123 = vadd.f32 %v2087, %v2121
        %v2124 = vadd.f32 %v2088, %v2121
        %v2125 = vadd.f32 %v2089, %v2121
        %v2126 = vadd.f32 %v2090, %v2121
        %v2127 = vadd.f32 %v2091, %v2121
        %v2128 = vadd.f32 %v2092, %v2121
        %v2129 = vadd.f32 %v2093, %v2121
        %v2130 = vadd.f32 %v2094, %v2121
        %v2131 = vadd.f32 %v2095, %v2121
        %v2132 = vadd.f32 %v2096, %v2121
        %v2133 = vadd.f32 %v2097, %v2121
        %v2134 = vadd.f32 %v2098, %v2121
        %v2135 = vadd.f32 %v2099, %v2121
        %v2136 = vadd.f32 %v2100, %v2121
        %v2137 = vadd.f32 %v2101, %v2121
        %v2138 = vadd.f32 %v2102, %v2121
        %v2139 = vadd.f32 %v2103, %v2121
        %v2140 = vadd.f32 %v2104, %v2121
        %v2141 = vadd.f32 %v2105, %v2121
        %v2142 = vadd.f32 %v2106, %v2121
        %v2143 = vadd.f32 %v2107, %v2121
        %v2144 = vadd.f32 %v2108, %v2121
        %v2145 = vadd.f32 %v2109, %v2121
        %v2146 = vadd.f32 %v2110, %v2121
        %v2147 = vadd.f32 %v2111, %v2121
        %v2148 = vadd.f32 %v2112, %v2121
        %v2149 = vadd.f32 %v2113, %v2121
        %v2150 = vadd.f32 %v2114, %v2121
        %v2151 = vadd.f32 %v2115, %v2121
        %v2152 = vadd.f32 %v2116, %v2121
        %v2153 = vadd.f32 %v2117, %v2121
        %v2154 = vld [vmem:[#allocation8] sm:$0xff]
        %v2155 = vld [vmem:[#allocation8 + $0x8] sm:$0xff]
        %v2156 = vld [vmem:[#allocation8 + $0x10] sm:$0xff]
        %v2157 = vld [vmem:[#allocation8 + $0x18] sm:$0xff]
        %v2158 = vld [vmem:[#allocation8 + $0x20] sm:$0xff]
        %v2159 = vld [vmem:[#allocation8 + $0x28] sm:$0xff]
        %v2160 = vld [vmem:[#allocation8 + $0x30] sm:$0xff]
        %v2161 = vld [vmem:[#allocation8 + $0x38] sm:$0xff]
        %v2162 = vld [vmem:[#allocation8 + $0x40] sm:$0xff]
        %v2163 = vld [vmem:[#allocation8 + $0x48] sm:$0xff]
        %v2164 = vld [vmem:[#allocation8 + $0x50] sm:$0xff]
        %v2165 = vld [vmem:[#allocation8 + $0x58] sm:$0xff]
        %v2166 = vld [vmem:[#allocation8 + $0x60] sm:$0xff]
        %v2167 = vld [vmem:[#allocation8 + $0x68] sm:$0xff]
        %v2168 = vld [vmem:[#allocation8 + $0x70] sm:$0xff]
        %v2169 = vld [vmem:[#allocation8 + $0x78] sm:$0xff]
        %v2170 = vld [vmem:[%s5] sm:$0x1]
        %v2172 = vlaneseq
        %v2173 = vshrl.u32 %v2172, 7
        %v2174 = vsub.s32 0, %v2173
        %v2175 = vrot.slane %v2170, %v2174
        %2177 = vmatprep.subr.mxu0 0.0
        %2178 = vmatpush1.msra.mxu0 %v2154
        %2179 = vmatprep.subr.mxu0 0.0
        %2180 = vmatpush1.msra.mxu0 %v2155
        %2181 = vmatprep.subr.mxu0 0.0
        %2182 = vmatpush1.msra.mxu0 %v2156
        %2183 = vmatprep.subr.mxu0 0.0
        %2184 = vmatpush1.msra.mxu0 %v2157
        %2185 = vmatprep.subr.mxu0 0.0
        %2186 = vmatpush1.msra.mxu0 %v2158
        %2187 = vmatprep.subr.mxu0 0.0
        %2188 = vmatpush1.msra.mxu0 %v2159
        %2189 = vmatprep.subr.mxu0 0.0
        %2190 = vmatpush1.msra.mxu0 %v2160
        %2191 = vmatprep.subr.mxu0 0.0
        %2192 = vmatpush1.msra.mxu0 %v2161
        %2193 = vmatprep.subr.mxu0 0.0
        %2194 = vmatpush1.msra.mxu0 %v2162
        %2195 = vmatprep.subr.mxu0 0.0
        %2196 = vmatpush1.msra.mxu0 %v2163
        %2197 = vmatprep.subr.mxu0 0.0
        %2198 = vmatpush1.msra.mxu0 %v2164
        %2199 = vmatprep.subr.mxu0 0.0
        %2200 = vmatpush1.msra.mxu0 %v2165
        %2201 = vmatprep.subr.mxu0 0.0
        %2202 = vmatpush1.msra.mxu0 %v2166
        %2203 = vmatprep.subr.mxu0 0.0
        %2204 = vmatpush1.msra.mxu0 %v2167
        %2205 = vmatprep.subr.mxu0 0.0
        %2206 = vmatpush1.msra.mxu0 %v2168
        %2207 = vmatprep.subr.mxu0 0.0
        %2208 = vmatpush1.msra.mxu0 %v2169
        %2209 = vmatprep.subr.mxu0 0.0
        %2210 = vmatpush1.msra.mxu0 0.0
        %2211 = vmatprep.subr.mxu0 0.0
        %2212 = vmatpush1.msra.mxu0 0.0
        %2213 = vmatprep.subr.mxu0 0.0
        %2214 = vmatpush1.msra.mxu0 0.0
        %2215 = vmatprep.subr.mxu0 0.0
        %2216 = vmatpush1.msra.mxu0 0.0
        %2217 = vmatprep.subr.mxu0 0.0
        %2218 = vmatpush1.msra.mxu0 0.0
        %2219 = vmatprep.subr.mxu0 0.0
        %2220 = vmatpush1.msra.mxu0 0.0
        %2221 = vmatprep.subr.mxu0 0.0
        %2222 = vmatpush1.msra.mxu0 0.0
        %2223 = vmatprep.subr.mxu0 0.0
        %2224 = vmatpush1.msra.mxu0 0.0
        %2225 = vmatprep.subr.mxu0 0.0
        %2226 = vmatpush1.msra.mxu0 0.0
        %2227 = vmatprep.subr.mxu0 0.0
        %2228 = vmatpush1.msra.mxu0 0.0
        %2229 = vmatprep.subr.mxu0 0.0
        %2230 = vmatpush1.msra.mxu0 0.0
        %2231 = vmatprep.subr.mxu0 0.0
        %2232 = vmatpush1.msra.mxu0 0.0
        %2233 = vmatprep.subr.mxu0 0.0
        %2234 = vmatpush1.msra.mxu0 0.0
        %2235 = vmatprep.subr.mxu0 0.0
        %2236 = vmatpush1.msra.mxu0 0.0
        %2237 = vmatprep.subr.mxu0 0.0
        %2238 = vmatpush1.msra.mxu0 0.0
        %2239 = vmatprep.subr.mxu0 0.0
        %2240 = vmatpush1.msra.mxu0 0.0
        %2241 = vmatprep.mubr.f32.mxu0 0.0
        %2242 = vmatmul.mubr.f32.gmra.mrb[0].mxu0 %v2122
        %v2243 = vpop.f32.mrb[0].mxu0
        %v2244 = vadd.f32 %v2175, %v2243
        %v2245 = vpop.f32.mrb[0].mxu0
        %2246 = vmatprep.mubr.f32.mxu0 0.0
        %2247 = vmatmul.mubr.f32.gmra.mrb[0].mxu0 %v2123
        %v2248 = vpop.f32.mrb[0].mxu0
        %v2249 = vadd.f32 %v2175, %v2248
        %v2250 = vpop.f32.mrb[0].mxu0
        %2251 = vmatprep.mubr.f32.mxu0 0.0
        %2252 = vmatmul.mubr.f32.gmra.mrb[0].mxu0 %v2124
        %v2253 = vpop.f32.mrb[0].mxu0
        %v2254 = vadd.f32 %v2175, %v2253
        %v2255 = vpop.f32.mrb[0].mxu0
        %2256 = vmatprep.mubr.f32.mxu0 0.0
        %2257 = vmatmul.mubr.f32.gmra.mrb[0].mxu0 %v2125
        %v2258 = vpop.f32.mrb[0].mxu0
        %v2259 = vadd.f32 %v2175, %v2258
        %v2260 = vpop.f32.mrb[0].mxu0
        %2261 = vmatprep.mubr.f32.mxu0 0.0
        %2262 = vmatmul.mubr.f32.gmra.mrb[0].mxu0 %v2126
        %v2263 = vpop.f32.mrb[0].mxu0
        %v2264 = vadd.f32 %v2175, %v2263
        %v2265 = vpop.f32.mrb[0].mxu0
        %2266 = vmatprep.mubr.f32.mxu0 0.0
        %2267 = vmatmul.mubr.f32.gmra.mrb[0].mxu0 %v2127
        %v2268 = vpop.f32.mrb[0].mxu0
        %v2269 = vadd.f32 %v2175, %v2268
        %v2270 = vpop.f32.mrb[0].mxu0
        %2271 = vmatprep.mubr.f32.mxu0 0.0
        %2272 = vmatmul.mubr.f32.gmra.mrb[0].mxu0 %v2128
        %v2273 = vpop.f32.mrb[0].mxu0
        %v2274 = vadd.f32 %v2175, %v2273
        %v2275 = vpop.f32.mrb[0].mxu0
        %2276 = vmatprep.mubr.f32.mxu0 0.0
        %2277 = vmatmul.mubr.f32.gmra.mrb[0].mxu0 %v2129
        %v2278 = vpop.f32.mrb[0].mxu0
        %v2279 = vadd.f32 %v2175, %v2278
        %v2280 = vpop.f32.mrb[0].mxu0
        %2281 = vmatprep.mubr.f32.mxu0 0.0
        %2282 = vmatmul.mubr.f32.gmra.mrb[0].mxu0 %v2130
        %v2283 = vpop.f32.mrb[0].mxu0
        %v2284 = vadd.f32 %v2175, %v2283
        %v2285 = vpop.f32.mrb[0].mxu0
        %2286 = vmatprep.mubr.f32.mxu0 0.0
        %2287 = vmatmul.mubr.f32.gmra.mrb[0].mxu0 %v2131
        %v2288 = vpop.f32.mrb[0].mxu0
        %v2289 = vadd.f32 %v2175, %v2288
        %v2290 = vpop.f32.mrb[0].mxu0
        %2291 = vmatprep.mubr.f32.mxu0 0.0
        %2292 = vmatmul.mubr.f32.gmra.mrb[0].mxu0 %v2132
        %v2293 = vpop.f32.mrb[0].mxu0
        %v2294 = vadd.f32 %v2175, %v2293
        %v2295 = vpop.f32.mrb[0].mxu0
        %2296 = vmatprep.mubr.f32.mxu0 0.0
        %2297 = vmatmul.mubr.f32.gmra.mrb[0].mxu0 %v2133
        %v2298 = vpop.f32.mrb[0].mxu0
        %v2299 = vadd.f32 %v2175, %v2298
        %v2300 = vpop.f32.mrb[0].mxu0
        %2301 = vmatprep.mubr.f32.mxu0 0.0
        %2302 = vmatmul.mubr.f32.gmra.mrb[0].mxu0 %v2134
        %v2303 = vpop.f32.mrb[0].mxu0
        %v2304 = vadd.f32 %v2175, %v2303
        %v2305 = vpop.f32.mrb[0].mxu0
        %2306 = vmatprep.mubr.f32.mxu0 0.0
        %2307 = vmatmul.mubr.f32.gmra.mrb[0].mxu0 %v2135
        %v2308 = vpop.f32.mrb[0].mxu0
        %v2309 = vadd.f32 %v2175, %v2308
        %v2310 = vpop.f32.mrb[0].mxu0
        %2311 = vmatprep.mubr.f32.mxu0 0.0
        %2312 = vmatmul.mubr.f32.gmra.mrb[0].mxu0 %v2136
        %v2313 = vpop.f32.mrb[0].mxu0
        %v2314 = vadd.f32 %v2175, %v2313
        %v2315 = vpop.f32.mrb[0].mxu0
        %2316 = vmatprep.mubr.f32.mxu0 0.0
        %2317 = vmatmul.mubr.f32.gmra.mrb[0].mxu0 %v2137
        %v2318 = vpop.f32.mrb[0].mxu0
        %v2319 = vadd.f32 %v2175, %v2318
        %v2320 = vpop.f32.mrb[0].mxu0
        %2321 = vmatprep.mubr.f32.mxu0 0.0
        %2322 = vmatmul.mubr.f32.gmra.mrb[0].mxu0 %v2138
        %v2323 = vpop.f32.mrb[0].mxu0
        %v2324 = vadd.f32 %v2175, %v2323
        %v2325 = vpop.f32.mrb[0].mxu0
        %2326 = vmatprep.mubr.f32.mxu0 0.0
        %2327 = vmatmul.mubr.f32.gmra.mrb[0].mxu0 %v2139
        %v2328 = vpop.f32.mrb[0].mxu0
        %v2329 = vadd.f32 %v2175, %v2328
        %v2330 = vpop.f32.mrb[0].mxu0
        %2331 = vmatprep.mubr.f32.mxu0 0.0
        %2332 = vmatmul.mubr.f32.gmra.mrb[0].mxu0 %v2140
        %v2333 = vpop.f32.mrb[0].mxu0
        %v2334 = vadd.f32 %v2175, %v2333
        %v2335 = vpop.f32.mrb[0].mxu0
        %2336 = vmatprep.mubr.f32.mxu0 0.0
        %2337 = vmatmul.mubr.f32.gmra.mrb[0].mxu0 %v2141
        %v2338 = vpop.f32.mrb[0].mxu0
        %v2339 = vadd.f32 %v2175, %v2338
        %v2340 = vpop.f32.mrb[0].mxu0
        %2341 = vmatprep.mubr.f32.mxu0 0.0
        %2342 = vmatmul.mubr.f32.gmra.mrb[0].mxu0 %v2142
        %v2343 = vpop.f32.mrb[0].mxu0
        %v2344 = vadd.f32 %v2175, %v2343
        %v2345 = vpop.f32.mrb[0].mxu0
        %2346 = vmatprep.mubr.f32.mxu0 0.0
        %2347 = vmatmul.mubr.f32.gmra.mrb[0].mxu0 %v2143
        %v2348 = vpop.f32.mrb[0].mxu0
        %v2349 = vadd.f32 %v2175, %v2348
        %v2350 = vpop.f32.mrb[0].mxu0
        %2351 = vmatprep.mubr.f32.mxu0 0.0
        %2352 = vmatmul.mubr.f32.gmra.mrb[0].mxu0 %v2144
        %v2353 = vpop.f32.mrb[0].mxu0
        %v2354 = vadd.f32 %v2175, %v2353
        %v2355 = vpop.f32.mrb[0].mxu0
        %2356 = vmatprep.mubr.f32.mxu0 0.0
        %2357 = vmatmul.mubr.f32.gmra.mrb[0].mxu0 %v2145
        %v2358 = vpop.f32.mrb[0].mxu0
        %v2359 = vadd.f32 %v2175, %v2358
        %v2360 = vpop.f32.mrb[0].mxu0
        %2361 = vmatprep.mubr.f32.mxu0 0.0
        %2362 = vmatmul.mubr.f32.gmra.mrb[0].mxu0 %v2146
        %v2363 = vpop.f32.mrb[0].mxu0
        %v2364 = vadd.f32 %v2175, %v2363
        %v2365 = vpop.f32.mrb[0].mxu0
        %2366 = vmatprep.mubr.f32.mxu0 0.0
        %2367 = vmatmul.mubr.f32.gmra.mrb[0].mxu0 %v2147
        %v2368 = vpop.f32.mrb[0].mxu0
        %v2369 = vadd.f32 %v2175, %v2368
        %v2370 = vpop.f32.mrb[0].mxu0
        %2371 = vmatprep.mubr.f32.mxu0 0.0
        %2372 = vmatmul.mubr.f32.gmra.mrb[0].mxu0 %v2148
        %v2373 = vpop.f32.mrb[0].mxu0
        %v2374 = vadd.f32 %v2175, %v2373
        %v2375 = vpop.f32.mrb[0].mxu0
        %2376 = vmatprep.mubr.f32.mxu0 0.0
        %2377 = vmatmul.mubr.f32.gmra.mrb[0].mxu0 %v2149
        %v2378 = vpop.f32.mrb[0].mxu0
        %v2379 = vadd.f32 %v2175, %v2378
        %v2380 = vpop.f32.mrb[0].mxu0
        %2381 = vmatprep.mubr.f32.mxu0 0.0
        %2382 = vmatmul.mubr.f32.gmra.mrb[0].mxu0 %v2150
        %v2383 = vpop.f32.mrb[0].mxu0
        %v2384 = vadd.f32 %v2175, %v2383
        %v2385 = vpop.f32.mrb[0].mxu0
        %2386 = vmatprep.mubr.f32.mxu0 0.0
        %2387 = vmatmul.mubr.f32.gmra.mrb[0].mxu0 %v2151
        %v2388 = vpop.f32.mrb[0].mxu0
        %v2389 = vadd.f32 %v2175, %v2388
        %v2390 = vpop.f32.mrb[0].mxu0
        %2391 = vmatprep.mubr.f32.mxu0 0.0
        %2392 = vmatmul.mubr.f32.gmra.mrb[0].mxu0 %v2152
        %v2393 = vpop.f32.mrb[0].mxu0
        %v2394 = vadd.f32 %v2175, %v2393
        %v2395 = vpop.f32.mrb[0].mxu0
        %2396 = vmatprep.mubr.f32.mxu0 0.0
        %2397 = vmatmul.mubr.f32.gmra.mrb[0].mxu0 %v2153
        %v2398 = vpop.f32.mrb[0].mxu0
        %v2399 = vadd.f32 %v2175, %v2398
        %v2400 = vpop.f32.mrb[0].mxu0
        %2401 = vdwg.mxu0
        %v2402 = vadd.f32 %v2244, %v336
        %v2403 = vadd.f32 %v2249, %v337
        %v2404 = vadd.f32 %v2254, %v338
        %v2405 = vadd.f32 %v2259, %v339
        %v2406 = vadd.f32 %v2264, %v340
        %v2407 = vadd.f32 %v2269, %v341
        %v2408 = vadd.f32 %v2274, %v342
        %v2409 = vadd.f32 %v2279, %v343
        %v2410 = vadd.f32 %v2284, %v344
        %v2411 = vadd.f32 %v2289, %v345
        %v2412 = vadd.f32 %v2294, %v346
        %v2413 = vadd.f32 %v2299, %v347
        %v2414 = vadd.f32 %v2304, %v348
        %v2415 = vadd.f32 %v2309, %v349
        %v2416 = vadd.f32 %v2314, %v350
        %v2417 = vadd.f32 %v2319, %v351
        %v2418 = vadd.f32 %v2324, %v352
        %v2419 = vadd.f32 %v2329, %v353
        %v2420 = vadd.f32 %v2334, %v354
        %v2421 = vadd.f32 %v2339, %v355
        %v2422 = vadd.f32 %v2344, %v356
        %v2423 = vadd.f32 %v2349, %v357
        %v2424 = vadd.f32 %v2354, %v358
        %v2425 = vadd.f32 %v2359, %v359
        %v2426 = vadd.f32 %v2364, %v360
        %v2427 = vadd.f32 %v2369, %v361
        %v2428 = vadd.f32 %v2374, %v362
        %v2429 = vadd.f32 %v2379, %v363
        %v2430 = vadd.f32 %v2384, %v364
        %v2431 = vadd.f32 %v2389, %v365
        %v2432 = vadd.f32 %v2394, %v366
        %v2433 = vadd.f32 %v2399, %v367
        %v2434 = vmul.f32 %v2402, 0.5
        %v2435 = vmul.f32 %v2403, 0.5
        %v2436 = vmul.f32 %v2404, 0.5
        %v2437 = vmul.f32 %v2405, 0.5
        %v2438 = vmul.f32 %v2406, 0.5
        %v2439 = vmul.f32 %v2407, 0.5
        %v2440 = vmul.f32 %v2408, 0.5
        %v2441 = vmul.f32 %v2409, 0.5
        %v2442 = vmul.f32 %v2410, 0.5
        %v2443 = vmul.f32 %v2411, 0.5
        %v2444 = vmul.f32 %v2412, 0.5
        %v2445 = vmul.f32 %v2413, 0.5
        %v2446 = vmul.f32 %v2414, 0.5
        %v2447 = vmul.f32 %v2415, 0.5
        %v2448 = vmul.f32 %v2416, 0.5
        %v2449 = vmul.f32 %v2417, 0.5
        %v2450 = vmul.f32 %v2418, 0.5
        %v2451 = vmul.f32 %v2419, 0.5
        %v2452 = vmul.f32 %v2420, 0.5
        %v2453 = vmul.f32 %v2421, 0.5
        %v2454 = vmul.f32 %v2422, 0.5
        %v2455 = vmul.f32 %v2423, 0.5
        %v2456 = vmul.f32 %v2424, 0.5
        %v2457 = vmul.f32 %v2425, 0.5
        %v2458 = vmul.f32 %v2426, 0.5
        %v2459 = vmul.f32 %v2427, 0.5
        %v2460 = vmul.f32 %v2428, 0.5
        %v2461 = vmul.f32 %v2429, 0.5
        %v2462 = vmul.f32 %v2430, 0.5
        %v2463 = vmul.f32 %v2431, 0.5
        %v2464 = vmul.f32 %v2432, 0.5
        %v2465 = vmul.f32 %v2433, 0.5
        %2466 = vst [vmem:[%s319] sm:$0xff] %v2434
        %2467 = vst [vmem:[%s319 + $0x8] sm:$0xff] %v2435
        %2468 = vst [vmem:[%s319 + $0x10] sm:$0xff] %v2436
        %2469 = vst [vmem:[%s319 + $0x18] sm:$0xff] %v2437
        %2470 = vst [vmem:[%s319 + $0x20] sm:$0xff] %v2438
        %2471 = vst [vmem:[%s319 + $0x28] sm:$0xff] %v2439
        %2472 = vst [vmem:[%s319 + $0x30] sm:$0xff] %v2440
        %2473 = vst [vmem:[%s319 + $0x38] sm:$0xff] %v2441
        %2474 = vst [vmem:[%s319 + $0x40] sm:$0xff] %v2442
        %2475 = vst [vmem:[%s319 + $0x48] sm:$0xff] %v2443
        %2476 = vst [vmem:[%s319 + $0x50] sm:$0xff] %v2444
        %2477 = vst [vmem:[%s319 + $0x58] sm:$0xff] %v2445
        %2478 = vst [vmem:[%s319 + $0x60] sm:$0xff] %v2446
        %2479 = vst [vmem:[%s319 + $0x68] sm:$0xff] %v2447
        %2480 = vst [vmem:[%s319 + $0x70] sm:$0xff] %v2448
        %2481 = vst [vmem:[%s319 + $0x78] sm:$0xff] %v2449
        %2482 = vst [vmem:[%s319 + $0x80] sm:$0xff] %v2450
        %2483 = vst [vmem:[%s319 + $0x88] sm:$0xff] %v2451
        %2484 = vst [vmem:[%s319 + $0x90] sm:$0xff] %v2452
        %2485 = vst [vmem:[%s319 + $0x98] sm:$0xff] %v2453
        %2486 = vst [vmem:[%s319 + $0xa0] sm:$0xff] %v2454
        %2487 = vst [vmem:[%s319 + $0xa8] sm:$0xff] %v2455
        %2488 = vst [vmem:[%s319 + $0xb0] sm:$0xff] %v2456
        %2489 = vst [vmem:[%s319 + $0xb8] sm:$0xff] %v2457
        %2490 = vst [vmem:[%s319 + $0xc0] sm:$0xff] %v2458
        %2491 = vst [vmem:[%s319 + $0xc8] sm:$0xff] %v2459
        %2492 = vst [vmem:[%s319 + $0xd0] sm:$0xff] %v2460
        %2493 = vst [vmem:[%s319 + $0xd8] sm:$0xff] %v2461
        %2494 = vst [vmem:[%s319 + $0xe0] sm:$0xff] %v2462
        %2495 = vst [vmem:[%s319 + $0xe8] sm:$0xff] %v2463
        %2496 = vst [vmem:[%s319 + $0xf0] sm:$0xff] %v2464
        %2497 = vst [vmem:[%s319 + $0xf8] sm:$0xff] %v2465
        %s2498 = sand.u32 %s164, 1
        %s2499 = scalar_lea.sflag [#allocation4], %s2498
        %s2500 = sand.u32 %s164, 1
        %s2501 = smul.addr %s2500, 256
        %s2502 = scalar_lea.vmem [#allocation10], %s2501
        // Predicated region
        $region61: #{tpu_custom_call.1} parent=43 // pred_check
          %p2503 = pneg %p174
        $region62: #{tpu_custom_call.1} parent=43 // pred_check_branch
          %2505 = sbr.rel (%p2503) target = $region64
        $region63: #{tpu_custom_call.1} parent=43 // pred_region
          %s2506 = smul.u32 32, %s25
          %s2507 = ssub.s32 63, %s2506
          %p2508 = scmp.lt.s32.totalorder %s2507, 32
          %s2509 = scalar_select %p2508, %s2507, 32
          %s2510 = smul.u32 128, %s2509
          %s2512 = ssub.s32 4096, %s2510
          %2513 = vsyncadd %s2499, %s2512
          %p2514 = scmp.ne.s32.totalorder 0, %s2510
          %s2515 = smul.addr %s2506, 128
          %s2516 = scalar_lea.hbm %s6, %s2515
          %s2517 = smul.u32 8, %s2509
          %s2518 = sshll.u32 %s2502, 4
          %s2519 = int_to_ptr.vmem [resolvable:$true] %s2518
          %s2520 = sshll.u32 %s2517, 4
          %2524 = dma.vmem_to_hbm [thread:$0]  (%p2514), %s2519, %s2520, %s2516, %s2499, 128, 128, 8
        $region64: #{tpu_custom_call.1} parent=43 // pred_fallthru
          _
      $region44: #{tpu_custom_call.1} parent=5 // pred_fallthru
        _
      %p2525 = scmp.le.s32.totalorder 2, %s20
      // Predicated region
      $region65: #{tpu_custom_call.1} parent=5 // pred_check
        %p2526 = pneg %p2525
      $region66: #{tpu_custom_call.1} parent=5 // pred_check_branch
        %2528 = sbr.rel (%p2526) target = $region68
      $region67: #{tpu_custom_call.1} parent=5 // pred_region
        %s2529 = ssub.s32 %s20, 2
        // Predicated region
        $region69: #{tpu_custom_call.1} parent=67 // pred_check
          %p2530 = pneg %p180
        $region70: #{tpu_custom_call.1} parent=67 // pred_check_branch
          %2532 = sbr.rel (%p2530) target = $region72
        $region71: #{tpu_custom_call.1} parent=67 // pred_region
          %s2533 = sand.u32 %s165, 1
          %s2534 = scalar_lea.sflag [#allocation4], %s2533
          %s2535 = sand.u32 %s165, 1
          %s2536 = smul.addr %s2535, 256
          %s2537 = scalar_lea.vmem [#allocation10], %s2536
          %2538 = dma.done %s2534, 4096
        $region72: #{tpu_custom_call.1} parent=67 // pred_fallthru
          _
      $region68: #{tpu_custom_call.1} parent=5 // pred_fallthru
        _
    $region6: #{tpu_custom_call.1} parent=1 // loop_footer
      %s24 = sadd.s32 1, %s20
    $region7: #{tpu_custom_call.1} parent=1 // loop_footer_branch
      %19 = sbr.rel target = $region3
    $region8: #{tpu_custom_call.1} parent=1 // loop_exit
      _
    %2539 = vsyncpa [#allocation3], 1
    %s2540 = scalar_lea.sflag [#allocation3], 1
    %2541 = vsyncpa %s2540, 1
    %2542 = vsyncpa [#allocation6], 1
    %2543 = vsyncpa [#allocation9], 1
    %2544 = vsyncpa [#allocation4], 1
    %s2545 = scalar_lea.sflag [#allocation4], 1
    %2546 = vsyncpa %s2545, 1

</llo_original>
